<compile_context>
chip_gen: v7x
topology: tpu7x:2x2x1
jax: 0.10.0
libtpu: 0.0.40
codegen_flags: <defaults>
</compile_context>

<pallas_src>
import numpy as np
import jax
import jax.numpy as jnp
from jax.experimental import pallas as pl
from jax.experimental.pallas import tpu as pltpu


_VMEM_LIMIT_BYTES = 48 * 1024 * 1024    # safe on v5e/v6e (128 MiB phys) and v7x (64 MiB phys)
_TILE_BUDGET_BYTES = 32 * 1024 * 1024   # target for the double-buffered per-step working set


# -----------------------------------------------------------------------------
# Constant pooling weights (built once per shape on host, tiny).
# -----------------------------------------------------------------------------
def _selector_tile(tn: int, dtype) -> jax.Array:
    """(9*tn, tn) 0/1 tile: output column c sums input elements [9c, 9c+9)."""
    r = np.arange(9 * tn)[:, None]
    c = np.arange(tn)[None, :]
    return jnp.asarray((r // 9) == c, dtype=dtype)


def _adaptive_pool_matrix(L: int, S: int, dtype=jnp.float32) -> jax.Array:
    """Exact adaptive_avg_pool1d(L -> S) as an (L, S) weight matrix (PyTorch windowing)."""
    j = np.arange(S)
    starts = (j * L) // S
    ends = -((-(j + 1) * L) // S)  # ceil((j+1)*L/S)
    l = np.arange(L)[:, None]
    in_win = (l >= starts[None, :]) & (l < ends[None, :])
    w = in_win.astype(np.float64) / (ends - starts).astype(np.float64)[None, :]
    return jnp.asarray(w, dtype=dtype)


# -----------------------------------------------------------------------------
# Fused kernel: all features -> one concatenated output, single pallas_call.
# -----------------------------------------------------------------------------
def _make_fused_kernel(plan, n_features):
    """plan: tuple of (S, tn, col_offset) per feature (all static Python ints)."""

    def kernel(*refs):
        x_refs = refs[:n_features]
        w_ref = refs[n_features]
        o_ref = refs[n_features + 1]
        tn_max = w_ref.shape[1]
        w_full = w_ref[...]
        inv9 = 1.0 / 9.0
        for x_ref, (S, tn, off) in zip(x_refs, plan):
            w = w_full if tn == tn_max else w_full[: 9 * tn, :tn]
            for c in range(S // tn):
                xs = x_ref[:, 9 * tn * c: 9 * tn * (c + 1)]          # static, lane-tile aligned
                acc = jnp.dot(xs, w, preferred_element_type=jnp.float32)
                o_ref[:, off + tn * c: off + tn * (c + 1)] = (acc * inv9).astype(o_ref.dtype)

    return kernel


def _fused_preprocessing(features, Ls, Ss, tns, out_dtype, compute_dtype=None):
    B = features[0].shape[0]
    total = sum(Ss)
    n = len(features)
    tn_max = max(tns)

    xs = [f.reshape(B, L) for f, L in zip(features, Ls)]
    if compute_dtype is not None:
        xs = [x.astype(compute_dtype) for x in xs]
    w = _selector_tile(tn_max, xs[0].dtype)

    # Pick the largest row tile whose double-buffered working set fits the VMEM budget.
    in_item = jnp.dtype(xs[0].dtype).itemsize
    out_item = jnp.dtype(out_dtype).itemsize
    bytes_per_row = 2 * (sum(Ls) * in_item + total * out_item)
    budget = max(_TILE_BUDGET_BYTES - 2 * w.size * jnp.dtype(w.dtype).itemsize, 1 << 20)
    tm = 512
    while tm > 8 and tm * bytes_per_row > budget:
        tm //= 2
    tm_eff = B if B < tm else tm                       # block dim == full dim is always legal
    grid = (pl.cdiv(B, tm_eff),)

    offs = [0]
    for S in Ss:
        offs.append(offs[-1] + S)
    plan = tuple((S, tn, off) for S, tn, off in zip(Ss, tns, offs[:-1]))
    kernel = _make_fused_kernel(plan, n)

    in_specs = [pl.BlockSpec((tm_eff, L), lambda i: (i, 0)) for L in Ls]
    in_specs.append(pl.BlockSpec((9 * tn_max, tn_max), lambda i: (0, 0)))  # invariant weight
    out_spec = pl.BlockSpec((tm_eff, total), lambda i: (i, 0))

    cost = pl.CostEstimate(
        flops=2 * 9 * B * total,
        transcendentals=0,
        bytes_accessed=sum(int(x.size) * in_item for x in xs)
        + int(w.size) * jnp.dtype(w.dtype).itemsize
        + B * total * out_item,
    )
    return pl.pallas_call(
        kernel,
        out_shape=jax.ShapeDtypeStruct((B, total), out_dtype),
        grid=grid,
        in_specs=in_specs,
        out_specs=out_spec,
        compiler_params=pltpu.CompilerParams(
            dimension_semantics=("parallel",),
            vmem_limit_bytes=_VMEM_LIMIT_BYTES),
        cost_estimate=cost,
    )(*xs, w)


# -----------------------------------------------------------------------------
# General fallback kernel (exact adaptive windows, e.g. L % 9 != 0).
# -----------------------------------------------------------------------------
def _dense_pool_kernel(x_ref, w_ref, o_ref):
    o_ref[...] = jnp.dot(x_ref[...], w_ref[...],
                         preferred_element_type=jnp.float32).astype(o_ref.dtype)


def _general_mean_mapper(x, S, out_dtype, *, tm=128):
    B, L = x.shape
    w = _adaptive_pool_matrix(L, S, dtype=jnp.float32)
    tn_eff = 128 if S % 128 == 0 else S
    tm_eff = B if B < tm else tm
    grid = (pl.cdiv(B, tm_eff), S // tn_eff)
    return pl.pallas_call(
        _dense_pool_kernel,
        out_shape=jax.ShapeDtypeStruct((B, S), out_dtype),
        grid=grid,
        in_specs=[pl.BlockSpec((tm_eff, L), lambda i, j: (i, 0)),
                  pl.BlockSpec((L, tn_eff), lambda i, j: (0, j))],
        out_specs=pl.BlockSpec((tm_eff, tn_eff), lambda i, j: (i, j)),
        compiler_params=pltpu.CompilerParams(
            dimension_semantics=("parallel", "parallel"),
            vmem_limit_bytes=_VMEM_LIMIT_BYTES),
    )(x.astype(jnp.float32), w)


# -----------------------------------------------------------------------------
# Public API (matches PyTorch module semantics)
# -----------------------------------------------------------------------------
def _col_tile(S: int) -> int:
    return 128 if S % 128 == 0 else S


def mean_mapper(feature, *, compute_dtype=None):
    """Pallas equivalent of MeanMapper.forward: (B, ...) -> (B, prod(...) // 9)."""
    B = feature.shape[0]
    L = int(np.prod(feature.shape[1:]))
    S = L // 9
    if S == 0:
        raise ValueError(f"MeanMapper requires prod(feature.shape[1:]) >= 9, got {L}.")
    if L % 9 == 0 and _col_tile(S) <= 256:
        return _fused_preprocessing([feature], [L], [S], [_col_tile(S)],
                                    feature.dtype, compute_dtype)
    return _general_mean_mapper(feature.reshape(B, L), S, feature.dtype)


def preprocessing(features, *, compute_dtype=None):
    """Pallas equivalent of Preprocessing.forward: list of tensors -> (B, sum_i L_i // 9)."""
    features = list(features)
    if not features:
        raise ValueError("preprocessing() needs at least one feature tensor.")
    B = features[0].shape[0]
    out_dtype = features[0].dtype
    Ls = [int(np.prod(f.shape[1:])) for f in features]
    Ss = [L // 9 for L in Ls]
    if any(S == 0 for S in Ss):
        raise ValueError("Each feature needs prod(shape[1:]) >= 9.")
    tns = [_col_tile(S) for S in Ss]

    fusable = (
        all(f.shape[0] == B for f in features)
        and all(f.dtype == out_dtype for f in features)
        and all(L % 9 == 0 for L in Ls)
        and all(tn <= 256 for tn in tns)        # keeps the shared selector tile small
    )
    if fusable:
        return _fused_preprocessing(features, Ls, Ss, tns, out_dtype, compute_dtype)

    outs = [mean_mapper(f, compute_dtype=compute_dtype) for f in features]
    return jnp.concatenate(outs, axis=1)


# -----------------------------------------------------------------------------
# Pure-JAX reference of the PyTorch semantics (verification only).
# -----------------------------------------------------------------------------
def _reference(features):
    outs = []
    for f in features:
        B = f.shape[0]
        L = int(np.prod(f.shape[1:]))
        S = L // 9
        w = _adaptive_pool_matrix(L, S, dtype=jnp.float32)
        outs.append(f.reshape(B, L).astype(jnp.float32) @ w)
    return jnp.concatenate(outs, axis=1)


if __name__ == "__main__":
    key = jax.random.PRNGKey(0)
    k0, k1, k2, k3, k4 = jax.random.split(key, 5)

    # PatchCore-like shapes (kept small): (num_patches, C, 3, 3), C multiple of 128.
    # Exercises the fused, lane-aligned single-call fast path.  L = 9*C, S = C.
    f0 = jax.random.normal(k0, (16, 128, 3, 3), dtype=jnp.float32)   # S = 128
    f1 = jax.random.normal(k1, (16, 256, 3, 3), dtype=jnp.float32)   # S = 256
    out = jax.block_until_ready(preprocessing([f0, f1]))
    ref = jax.block_until_ready(_reference([f0, f1]))
    assert out.shape == (16, 384), out.shape
    np.testing.assert_allclose(np.asarray(out), np.asarray(ref), rtol=1e-5, atol=1e-5)

    # Tiny, non-lane-aligned shapes: still handled by the fused kernel (masked stores).
    g0 = jax.random.normal(k2, (2, 4, 3, 3), dtype=jnp.float32)      # L = 36 -> S = 4
    g1 = jax.random.normal(k3, (2, 8, 3, 3), dtype=jnp.float32)      # L = 72 -> S = 8
    out2 = jax.block_until_ready(preprocessing([g0, g1]))
    ref2 = jax.block_until_ready(_reference([g0, g1]))
    assert out2.shape == (2, 12), out2.shape
    np.testing.assert_allclose(np.asarray(out2), np.asarray(ref2), rtol=1e-5, atol=1e-5)

    # L not divisible by 9: general adaptive-window fallback kernel (uneven windows).
    h0 = jax.random.normal(k4, (2, 5, 2, 2), dtype=jnp.float32)      # L = 20 -> S = 2
    out3 = jax.block_until_ready(preprocessing([h0]))
    ref3 = jax.block_until_ready(_reference([h0]))
    np.testing.assert_allclose(np.asarray(out3), np.asarray(ref3), rtol=1e-5, atol=1e-5)

    print("KERNEL_OK")
</pallas_src>

<mosaic_0001>
module attributes {stable_mosaic.version = 11 : i64} {
  func.func @kernel(%arg0: i32, %arg1: memref<16x1152xf32, #tpu.memory_space<vmem>>, %arg2: memref<16x2304xf32, #tpu.memory_space<vmem>>, %arg3: memref<1152x128xf32, #tpu.memory_space<vmem>>, %arg4: memref<16x384xf32, #tpu.memory_space<vmem>>) attributes {dimension_semantics = [#tpu.dimension_semantics<parallel>], iteration_bounds = array<i64: 1>, scalar_prefetch = 0 : i64, scratch_operands = 0 : i64, tpu.core_type = #tpu.core_type<tc>, window_params = [{transform_indices = @transform_0, window_bounds = array<i64: 16, 1152>}, {transform_indices = @transform_1, window_bounds = array<i64: 16, 2304>}, {pipeline_mode = #tpu.pipeline_mode<synchronous>, transform_indices = @transform_2, window_bounds = array<i64: 1152, 128>}, {transform_indices = @transform_3, window_bounds = array<i64: 16, 384>}]} {
    %c0 = arith.constant 0 : index
    %c0_0 = arith.constant 0 : index
    %0 = vector.load %arg3[%c0, %c0_0] : memref<1152x128xf32, #tpu.memory_space<vmem>>, vector<1152x128xf32>
    %c0_1 = arith.constant 0 : index
    %c0_2 = arith.constant 0 : index
    %1 = vector.load %arg1[%c0_1, %c0_2] : memref<16x1152xf32, #tpu.memory_space<vmem>>, vector<16x1152xf32>
    %cst = arith.constant dense<0.000000e+00> : vector<16x128xf32>
    %2 = tpu.matmul %1, %0, %cst {dimension_numbers = #tpu.dot_dimension_numbers<[1], [0], [0], [1], [0, 0, 1, 1], [], []>} : vector<16x1152xf32>, vector<1152x128xf32>, vector<16x128xf32> -> vector<16x128xf32>
    %cst_3 = arith.constant 0.111111112 : f32
    %3 = vector.broadcast %cst_3 : f32 to vector<16x128xf32>
    %4 = arith.mulf %2, %3 : vector<16x128xf32>
    %c0_4 = arith.constant 0 : index
    %c0_5 = arith.constant 0 : index
    %5 = vector.load %arg4[%c0_4, %c0_5] : memref<16x384xf32, #tpu.memory_space<vmem>>, vector<16x128xf32>
    tpu.vector_store %arg4[%c0_4, %c0_5], %4 {strides = array<i32>} : memref<16x384xf32, #tpu.memory_space<vmem>>, vector<16x128xf32>,
    %c0_6 = arith.constant 0 : index
    %c0_7 = arith.constant 0 : index
    %6 = vector.load %arg2[%c0_6, %c0_7] : memref<16x2304xf32, #tpu.memory_space<vmem>>, vector<16x1152xf32>
    %cst_8 = arith.constant dense<0.000000e+00> : vector<16x128xf32>
    %7 = tpu.matmul %6, %0, %cst_8 {dimension_numbers = #tpu.dot_dimension_numbers<[1], [0], [0], [1], [0, 0, 1, 1], [], []>} : vector<16x1152xf32>, vector<1152x128xf32>, vector<16x128xf32> -> vector<16x128xf32>
    %cst_9 = arith.constant 0.111111112 : f32
    %8 = vector.broadcast %cst_9 : f32 to vector<16x128xf32>
    %9 = arith.mulf %7, %8 : vector<16x128xf32>
    %c0_10 = arith.constant 0 : index
    %c128 = arith.constant 128 : index
    %10 = vector.load %arg4[%c0_10, %c128] : memref<16x384xf32, #tpu.memory_space<vmem>>, vector<16x128xf32>
    tpu.vector_store %arg4[%c0_10, %c128], %9 {strides = array<i32>} : memref<16x384xf32, #tpu.memory_space<vmem>>, vector<16x128xf32>,
    %c0_11 = arith.constant 0 : index
    %c1152 = arith.constant 1152 : index
    %11 = vector.load %arg2[%c0_11, %c1152] : memref<16x2304xf32, #tpu.memory_space<vmem>>, vector<16x1152xf32>
    %cst_12 = arith.constant dense<0.000000e+00> : vector<16x128xf32>
    %12 = tpu.matmul %11, %0, %cst_12 {dimension_numbers = #tpu.dot_dimension_numbers<[1], [0], [0], [1], [0, 0, 1, 1], [], []>} : vector<16x1152xf32>, vector<1152x128xf32>, vector<16x128xf32> -> vector<16x128xf32>
    %cst_13 = arith.constant 0.111111112 : f32
    %13 = vector.broadcast %cst_13 : f32 to vector<16x128xf32>
    %14 = arith.mulf %12, %13 : vector<16x128xf32>
    %c0_14 = arith.constant 0 : index
    %c256 = arith.constant 256 : index
    %15 = vector.load %arg4[%c0_14, %c256] : memref<16x384xf32, #tpu.memory_space<vmem>>, vector<16x128xf32>
    tpu.vector_store %arg4[%c0_14, %c256], %14 {strides = array<i32>} : memref<16x384xf32, #tpu.memory_space<vmem>>, vector<16x128xf32>,
    return
  }
  func.func @transform_0(%arg0: i32) -> (i32, i32) {
    %c0_i32 = arith.constant 0 : i32
    %c0_i32_0 = arith.constant 0 : i32
    return %arg0, %c0_i32 : i32, i32
  }
  func.func @transform_1(%arg0: i32) -> (i32, i32) {
    %c0_i32 = arith.constant 0 : i32
    %c0_i32_0 = arith.constant 0 : i32
    return %arg0, %c0_i32 : i32, i32
  }
  func.func @transform_2(%arg0: i32) -> (i32, i32) {
    %c0_i32 = arith.constant 0 : i32
    %c0_i32_0 = arith.constant 0 : i32
    %c0_i32_1 = arith.constant 0 : i32
    return %c0_i32, %c0_i32_0 : i32, i32
  }
  func.func @transform_3(%arg0: i32) -> (i32, i32) {
    %c0_i32 = arith.constant 0 : i32
    %c0_i32_0 = arith.constant 0 : i32
    return %arg0, %c0_i32 : i32, i32
  }
}

</mosaic_0001>

<llo_original>
// kernel: tpu_custom_call.1
$region0: #{tpu_custom_call.1}
  #allocation0 [shape = 'u32[]', space=smem, size = 0x4, offset = 0x4, fixed_abs, tag = 'smem constant byte address 0x4 - core index']
  #allocation1 [shape = 'u32[144,128]{1,0:T(1,128)}', space=vmem, size = 0x12000, scoped, tag = 'internal scratch']
  %s0 = inlined_call_operand.hbm [shape: f32[16,1152], index: 0, kind: input, shape index: {}]
  %s1 = inlined_call_operand.hbm [shape: f32[16,2304], index: 1, kind: input, shape index: {}]
  %s2 = inlined_call_operand.hbm [shape: f32[1152,128], index: 2, kind: input, shape index: {}]
  %s3 = inlined_call_operand.hbm [shape: f32[16,384], index: 3, kind: output, shape index: {}]
  %s4 = sld [smem:[#allocation0]]
  $region34: #{tpu_custom_call.1} parent=0
    _
  %s6 = ssub.s32 1, %s4
  %s7 = scalar_select 0, %s6, %s4
  $region1: #{tpu_custom_call.1} parent=0
    #allocation2 [shape = 'u8[73728]{0}', space=vmem, size = 0x12000, scoped, tag = 'input window, operand 0, single buffered']
    #allocation3 [shape = 's32[1]{0}', space=sflag, size = 0x4, scoped, tag = 'scoped memory for tpu_custom_call.1']
    #allocation4 [shape = 's32[1]{0}', space=sflag, size = 0x4, scoped, tag = 'scoped memory for tpu_custom_call.1']
    #allocation5 [shape = 'u8[147456]{0}', space=vmem, size = 0x24000, scoped, tag = 'input window, operand 1, single buffered']
    #allocation6 [shape = 's32[1]{0}', space=sflag, size = 0x4, scoped, tag = 'scoped memory for tpu_custom_call.1']
    #allocation7 [shape = 'u8[589824]{0}', space=vmem, size = 0x90000, scoped, tag = 'input window, operand 2, single buffered']
    #allocation8 [shape = 'u8[24576]{0}', space=vmem, size = 0x6000, scoped, tag = 'output window, operand 0, single buffered']
    %8 = vsyncpa [#allocation3], 0
    %9 = vsyncpa [#allocation6], 0
    %10 = vsyncpa [#allocation4], 0
    // Predicated region
    $region2: #{tpu_custom_call.1} parent=1 // pred_check
      _
    $region3: #{tpu_custom_call.1} parent=1 // pred_check_branch
      %12 = sbr.rel (0) target = $region5
    $region4: #{tpu_custom_call.1} parent=1 // pred_region
      %s14 = ssub.s32 2304, 2304
      %15 = vsyncadd [#allocation3], %s14
      %s16 = sshll.u32 [#allocation2], 4
      %s17 = int_to_ptr.vmem [resolvable:$true] %s16
      %22 = dma.hbm_to_vmem [thread:$0]  %s0, 2304, %s17, [#allocation3], 1152, 1152, 72
    $region5: #{tpu_custom_call.1} parent=1 // pred_fallthru
      _
    // Predicated region
    $region6: #{tpu_custom_call.1} parent=1 // pred_check
      _
    $region7: #{tpu_custom_call.1} parent=1 // pred_check_branch
      %24 = sbr.rel (0) target = $region9
    $region8: #{tpu_custom_call.1} parent=1 // pred_region
      %s26 = ssub.s32 4608, 4608
      %27 = vsyncadd [#allocation6], %s26
      %s28 = sshll.u32 [#allocation5], 4
      %s29 = int_to_ptr.vmem [resolvable:$true] %s28
      %34 = dma.hbm_to_vmem [thread:$0]  %s1, 4608, %s29, [#allocation6], 2304, 2304, 144
    $region9: #{tpu_custom_call.1} parent=1 // pred_fallthru
      _
    // Predicated region
    $region10: #{tpu_custom_call.1} parent=1 // pred_check
      _
    $region11: #{tpu_custom_call.1} parent=1 // pred_check_branch
      %36 = sbr.rel (0) target = $region13
    $region12: #{tpu_custom_call.1} parent=1 // pred_region
      %s38 = ssub.s32 18432, 18432
      %39 = vsyncadd [#allocation6], %s38
      %s40 = sshll.u32 [#allocation7], 4
      %s41 = int_to_ptr.vmem [resolvable:$true] %s40
      %46 = dma.hbm_to_vmem [thread:$0]  %s2, 18432, %s41, [#allocation6], 128, 128, 8
    $region13: #{tpu_custom_call.1} parent=1 // pred_fallthru
      _
    // Predicated region
    $region14: #{tpu_custom_call.1} parent=1 // pred_check
      _
    $region15: #{tpu_custom_call.1} parent=1 // pred_check_branch
      %48 = sbr.rel (0) target = $region17
    $region16: #{tpu_custom_call.1} parent=1 // pred_region
      %49 = dma.done [#allocation3], 2304
    $region17: #{tpu_custom_call.1} parent=1 // pred_fallthru
      _
    // Predicated region
    $region18: #{tpu_custom_call.1} parent=1 // pred_check
      _
    $region19: #{tpu_custom_call.1} parent=1 // pred_check_branch
      %51 = sbr.rel (0) target = $region21
    $region20: #{tpu_custom_call.1} parent=1 // pred_region
      %52 = dma.done [#allocation6], 4608
    $region21: #{tpu_custom_call.1} parent=1 // pred_fallthru
      _
    // Predicated region
    $region22: #{tpu_custom_call.1} parent=1 // pred_check
      _
    $region23: #{tpu_custom_call.1} parent=1 // pred_check_branch
      %54 = sbr.rel (0) target = $region25
    $region24: #{tpu_custom_call.1} parent=1 // pred_region
      %55 = dma.done [#allocation6], 18432
    $region25: #{tpu_custom_call.1} parent=1 // pred_fallthru
      _
    %v56 = vld [vmem:[#allocation7] sm:$0xff]
    %v57 = vld [vmem:[#allocation7 + $0x8] sm:$0xff]
    %v58 = vld [vmem:[#allocation7 + $0x10] sm:$0xff]
    %v59 = vld [vmem:[#allocation7 + $0x18] sm:$0xff]
    %v60 = vld [vmem:[#allocation7 + $0x20] sm:$0xff]
    %v61 = vld [vmem:[#allocation7 + $0x28] sm:$0xff]
    %v62 = vld [vmem:[#allocation7 + $0x30] sm:$0xff]
    %v63 = vld [vmem:[#allocation7 + $0x38] sm:$0xff]
    %v64 = vld [vmem:[#allocation7 + $0x40] sm:$0xff]
    %v65 = vld [vmem:[#allocation7 + $0x48] sm:$0xff]
    %v66 = vld [vmem:[#allocation7 + $0x50] sm:$0xff]
    %v67 = vld [vmem:[#allocation7 + $0x58] sm:$0xff]
    %v68 = vld [vmem:[#allocation7 + $0x60] sm:$0xff]
    %v69 = vld [vmem:[#allocation7 + $0x68] sm:$0xff]
    %v70 = vld [vmem:[#allocation7 + $0x70] sm:$0xff]
    %v71 = vld [vmem:[#allocation7 + $0x78] sm:$0xff]
    %v72 = vld [vmem:[#allocation7 + $0x80] sm:$0xff]
    %v73 = vld [vmem:[#allocation7 + $0x88] sm:$0xff]
    %v74 = vld [vmem:[#allocation7 + $0x90] sm:$0xff]
    %v75 = vld [vmem:[#allocation7 + $0x98] sm:$0xff]
    %v76 = vld [vmem:[#allocation7 + $0xa0] sm:$0xff]
    %v77 = vld [vmem:[#allocation7 + $0xa8] sm:$0xff]
    %v78 = vld [vmem:[#allocation7 + $0xb0] sm:$0xff]
    %v79 = vld [vmem:[#allocation7 + $0xb8] sm:$0xff]
    %v80 = vld [vmem:[#allocation7 + $0xc0] sm:$0xff]
    %v81 = vld [vmem:[#allocation7 + $0xc8] sm:$0xff]
    %v82 = vld [vmem:[#allocation7 + $0xd0] sm:$0xff]
    %v83 = vld [vmem:[#allocation7 + $0xd8] sm:$0xff]
    %v84 = vld [vmem:[#allocation7 + $0xe0] sm:$0xff]
    %v85 = vld [vmem:[#allocation7 + $0xe8] sm:$0xff]
    %v86 = vld [vmem:[#allocation7 + $0xf0] sm:$0xff]
    %v87 = vld [vmem:[#allocation7 + $0xf8] sm:$0xff]
    %v88 = vld [vmem:[#allocation7 + $0x100] sm:$0xff]
    %v89 = vld [vmem:[#allocation7 + $0x108] sm:$0xff]
    %v90 = vld [vmem:[#allocation7 + $0x110] sm:$0xff]
    %v91 = vld [vmem:[#allocation7 + $0x118] sm:$0xff]
    %v92 = vld [vmem:[#allocation7 + $0x120] sm:$0xff]
    %v93 = vld [vmem:[#allocation7 + $0x128] sm:$0xff]
    %v94 = vld [vmem:[#allocation7 + $0x130] sm:$0xff]
    %v95 = vld [vmem:[#allocation7 + $0x138] sm:$0xff]
    %v96 = vld [vmem:[#allocation7 + $0x140] sm:$0xff]
    %v97 = vld [vmem:[#allocation7 + $0x148] sm:$0xff]
    %v98 = vld [vmem:[#allocation7 + $0x150] sm:$0xff]
    %v99 = vld [vmem:[#allocation7 + $0x158] sm:$0xff]
    %v100 = vld [vmem:[#allocation7 + $0x160] sm:$0xff]
    %v101 = vld [vmem:[#allocation7 + $0x168] sm:$0xff]
    %v102 = vld [vmem:[#allocation7 + $0x170] sm:$0xff]
    %v103 = vld [vmem:[#allocation7 + $0x178] sm:$0xff]
    %v104 = vld [vmem:[#allocation7 + $0x180] sm:$0xff]
    %v105 = vld [vmem:[#allocation7 + $0x188] sm:$0xff]
    %v106 = vld [vmem:[#allocation7 + $0x190] sm:$0xff]
    %v107 = vld [vmem:[#allocation7 + $0x198] sm:$0xff]
    %v108 = vld [vmem:[#allocation7 + $0x1a0] sm:$0xff]
    %v109 = vld [vmem:[#allocation7 + $0x1a8] sm:$0xff]
    %v110 = vld [vmem:[#allocation7 + $0x1b0] sm:$0xff]
    %v111 = vld [vmem:[#allocation7 + $0x1b8] sm:$0xff]
    %v112 = vld [vmem:[#allocation7 + $0x1c0] sm:$0xff]
    %v113 = vld [vmem:[#allocation7 + $0x1c8] sm:$0xff]
    %v114 = vld [vmem:[#allocation7 + $0x1d0] sm:$0xff]
    %v115 = vld [vmem:[#allocation7 + $0x1d8] sm:$0xff]
    %v116 = vld [vmem:[#allocation7 + $0x1e0] sm:$0xff]
    %v117 = vld [vmem:[#allocation7 + $0x1e8] sm:$0xff]
    %v118 = vld [vmem:[#allocation7 + $0x1f0] sm:$0xff]
    %v119 = vld [vmem:[#allocation7 + $0x1f8] sm:$0xff]
    %v120 = vld [vmem:[#allocation7 + $0x200] sm:$0xff]
    %v121 = vld [vmem:[#allocation7 + $0x208] sm:$0xff]
    %v122 = vld [vmem:[#allocation7 + $0x210] sm:$0xff]
    %v123 = vld [vmem:[#allocation7 + $0x218] sm:$0xff]
    %v124 = vld [vmem:[#allocation7 + $0x220] sm:$0xff]
    %v125 = vld [vmem:[#allocation7 + $0x228] sm:$0xff]
    %v126 = vld [vmem:[#allocation7 + $0x230] sm:$0xff]
    %v127 = vld [vmem:[#allocation7 + $0x238] sm:$0xff]
    %v128 = vld [vmem:[#allocation7 + $0x240] sm:$0xff]
    %v129 = vld [vmem:[#allocation7 + $0x248] sm:$0xff]
    %v130 = vld [vmem:[#allocation7 + $0x250] sm:$0xff]
    %v131 = vld [vmem:[#allocation7 + $0x258] sm:$0xff]
    %v132 = vld [vmem:[#allocation7 + $0x260] sm:$0xff]
    %v133 = vld [vmem:[#allocation7 + $0x268] sm:$0xff]
    %v134 = vld [vmem:[#allocation7 + $0x270] sm:$0xff]
    %v135 = vld [vmem:[#allocation7 + $0x278] sm:$0xff]
    %v136 = vld [vmem:[#allocation7 + $0x280] sm:$0xff]
    %v137 = vld [vmem:[#allocation7 + $0x288] sm:$0xff]
    %v138 = vld [vmem:[#allocation7 + $0x290] sm:$0xff]
    %v139 = vld [vmem:[#allocation7 + $0x298] sm:$0xff]
    %v140 = vld [vmem:[#allocation7 + $0x2a0] sm:$0xff]
    %v141 = vld [vmem:[#allocation7 + $0x2a8] sm:$0xff]
    %v142 = vld [vmem:[#allocation7 + $0x2b0] sm:$0xff]
    %v143 = vld [vmem:[#allocation7 + $0x2b8] sm:$0xff]
    %v144 = vld [vmem:[#allocation7 + $0x2c0] sm:$0xff]
    %v145 = vld [vmem:[#allocation7 + $0x2c8] sm:$0xff]
    %v146 = vld [vmem:[#allocation7 + $0x2d0] sm:$0xff]
    %v147 = vld [vmem:[#allocation7 + $0x2d8] sm:$0xff]
    %v148 = vld [vmem:[#allocation7 + $0x2e0] sm:$0xff]
    %v149 = vld [vmem:[#allocation7 + $0x2e8] sm:$0xff]
    %v150 = vld [vmem:[#allocation7 + $0x2f0] sm:$0xff]
    %v151 = vld [vmem:[#allocation7 + $0x2f8] sm:$0xff]
    %v152 = vld [vmem:[#allocation7 + $0x300] sm:$0xff]
    %v153 = vld [vmem:[#allocation7 + $0x308] sm:$0xff]
    %v154 = vld [vmem:[#allocation7 + $0x310] sm:$0xff]
    %v155 = vld [vmem:[#allocation7 + $0x318] sm:$0xff]
    %v156 = vld [vmem:[#allocation7 + $0x320] sm:$0xff]
    %v157 = vld [vmem:[#allocation7 + $0x328] sm:$0xff]
    %v158 = vld [vmem:[#allocation7 + $0x330] sm:$0xff]
    %v159 = vld [vmem:[#allocation7 + $0x338] sm:$0xff]
    %v160 = vld [vmem:[#allocation7 + $0x340] sm:$0xff]
    %v161 = vld [vmem:[#allocation7 + $0x348] sm:$0xff]
    %v162 = vld [vmem:[#allocation7 + $0x350] sm:$0xff]
    %v163 = vld [vmem:[#allocation7 + $0x358] sm:$0xff]
    %v164 = vld [vmem:[#allocation7 + $0x360] sm:$0xff]
    %v165 = vld [vmem:[#allocation7 + $0x368] sm:$0xff]
    %v166 = vld [vmem:[#allocation7 + $0x370] sm:$0xff]
    %v167 = vld [vmem:[#allocation7 + $0x378] sm:$0xff]
    %v168 = vld [vmem:[#allocation7 + $0x380] sm:$0xff]
    %v169 = vld [vmem:[#allocation7 + $0x388] sm:$0xff]
    %v170 = vld [vmem:[#allocation7 + $0x390] sm:$0xff]
    %v171 = vld [vmem:[#allocation7 + $0x398] sm:$0xff]
    %v172 = vld [vmem:[#allocation7 + $0x3a0] sm:$0xff]
    %v173 = vld [vmem:[#allocation7 + $0x3a8] sm:$0xff]
    %v174 = vld [vmem:[#allocation7 + $0x3b0] sm:$0xff]
    %v175 = vld [vmem:[#allocation7 + $0x3b8] sm:$0xff]
    %v176 = vld [vmem:[#allocation7 + $0x3c0] sm:$0xff]
    %v177 = vld [vmem:[#allocation7 + $0x3c8] sm:$0xff]
    %v178 = vld [vmem:[#allocation7 + $0x3d0] sm:$0xff]
    %v179 = vld [vmem:[#allocation7 + $0x3d8] sm:$0xff]
    %v180 = vld [vmem:[#allocation7 + $0x3e0] sm:$0xff]
    %v181 = vld [vmem:[#allocation7 + $0x3e8] sm:$0xff]
    %v182 = vld [vmem:[#allocation7 + $0x3f0] sm:$0xff]
    %v183 = vld [vmem:[#allocation7 + $0x3f8] sm:$0xff]
    %v184 = vld [vmem:[#allocation7 + $0x400] sm:$0xff]
    %v185 = vld [vmem:[#allocation7 + $0x408] sm:$0xff]
    %v186 = vld [vmem:[#allocation7 + $0x410] sm:$0xff]
    %v187 = vld [vmem:[#allocation7 + $0x418] sm:$0xff]
    %v188 = vld [vmem:[#allocation7 + $0x420] sm:$0xff]
    %v189 = vld [vmem:[#allocation7 + $0x428] sm:$0xff]
    %v190 = vld [vmem:[#allocation7 + $0x430] sm:$0xff]
    %v191 = vld [vmem:[#allocation7 + $0x438] sm:$0xff]
    %v192 = vld [vmem:[#allocation7 + $0x440] sm:$0xff]
    %v193 = vld [vmem:[#allocation7 + $0x448] sm:$0xff]
    %v194 = vld [vmem:[#allocation7 + $0x450] sm:$0xff]
    %v195 = vld [vmem:[#allocation7 + $0x458] sm:$0xff]
    %v196 = vld [vmem:[#allocation7 + $0x460] sm:$0xff]
    %v197 = vld [vmem:[#allocation7 + $0x468] sm:$0xff]
    %v198 = vld [vmem:[#allocation7 + $0x470] sm:$0xff]
    %v199 = vld [vmem:[#allocation7 + $0x478] sm:$0xff]
    %v200 = vld [vmem:[#allocation2] sm:$0xff]
    %v201 = vld [vmem:[#allocation2 + $0x8] sm:$0xff]
    %v202 = vld [vmem:[#allocation2 + $0x10] sm:$0xff]
    %v203 = vld [vmem:[#allocation2 + $0x18] sm:$0xff]
    %v204 = vld [vmem:[#allocation2 + $0x20] sm:$0xff]
    %v205 = vld [vmem:[#allocation2 + $0x28] sm:$0xff]
    %v206 = vld [vmem:[#allocation2 + $0x30] sm:$0xff]
    %v207 = vld [vmem:[#allocation2 + $0x38] sm:$0xff]
    %v208 = vld [vmem:[#allocation2 + $0x40] sm:$0xff]
    %v209 = vld [vmem:[#allocation2 + $0x48] sm:$0xff]
    %v210 = vld [vmem:[#allocation2 + $0x50] sm:$0xff]
    %v211 = vld [vmem:[#allocation2 + $0x58] sm:$0xff]
    %v212 = vld [vmem:[#allocation2 + $0x60] sm:$0xff]
    %v213 = vld [vmem:[#allocation2 + $0x68] sm:$0xff]
    %v214 = vld [vmem:[#allocation2 + $0x70] sm:$0xff]
    %v215 = vld [vmem:[#allocation2 + $0x78] sm:$0xff]
    %v216 = vld [vmem:[#allocation2 + $0x80] sm:$0xff]
    %v217 = vld [vmem:[#allocation2 + $0x88] sm:$0xff]
    %218 = vmatprep.subr.mxu0 0.0
    %219 = vmatpush1.msra.mxu0 %v56
    %220 = vmatprep.subr.mxu0 0.0
    %221 = vmatpush1.msra.mxu0 %v57
    %222 = vmatprep.subr.mxu0 0.0
    %223 = vmatpush1.msra.mxu0 %v58
    %224 = vmatprep.subr.mxu0 0.0
    %225 = vmatpush1.msra.mxu0 %v59
    %226 = vmatprep.subr.mxu0 0.0
    %227 = vmatpush1.msra.mxu0 %v60
    %228 = vmatprep.subr.mxu0 0.0
    %229 = vmatpush1.msra.mxu0 %v61
    %230 = vmatprep.subr.mxu0 0.0
    %231 = vmatpush1.msra.mxu0 %v62
    %232 = vmatprep.subr.mxu0 0.0
    %233 = vmatpush1.msra.mxu0 %v63
    %234 = vmatprep.subr.mxu0 0.0
    %235 = vmatpush1.msra.mxu0 %v64
    %236 = vmatprep.subr.mxu0 0.0
    %237 = vmatpush1.msra.mxu0 %v65
    %238 = vmatprep.subr.mxu0 0.0
    %239 = vmatpush1.msra.mxu0 %v66
    %240 = vmatprep.subr.mxu0 0.0
    %241 = vmatpush1.msra.mxu0 %v67
    %242 = vmatprep.subr.mxu0 0.0
    %243 = vmatpush1.msra.mxu0 %v68
    %244 = vmatprep.subr.mxu0 0.0
    %245 = vmatpush1.msra.mxu0 %v69
    %246 = vmatprep.subr.mxu0 0.0
    %247 = vmatpush1.msra.mxu0 %v70
    %248 = vmatprep.subr.mxu0 0.0
    %249 = vmatpush1.msra.mxu0 %v71
    %250 = vmatprep.subr.mxu0 0.0
    %251 = vmatpush1.msra.mxu0 %v72
    %252 = vmatprep.subr.mxu0 0.0
    %253 = vmatpush1.msra.mxu0 %v73
    %254 = vmatprep.subr.mxu0 0.0
    %255 = vmatpush1.msra.mxu0 %v74
    %256 = vmatprep.subr.mxu0 0.0
    %257 = vmatpush1.msra.mxu0 %v75
    %258 = vmatprep.subr.mxu0 0.0
    %259 = vmatpush1.msra.mxu0 %v76
    %260 = vmatprep.subr.mxu0 0.0
    %261 = vmatpush1.msra.mxu0 %v77
    %262 = vmatprep.subr.mxu0 0.0
    %263 = vmatpush1.msra.mxu0 %v78
    %264 = vmatprep.subr.mxu0 0.0
    %265 = vmatpush1.msra.mxu0 %v79
    %266 = vmatprep.subr.mxu0 0.0
    %267 = vmatpush1.msra.mxu0 %v80
    %268 = vmatprep.subr.mxu0 0.0
    %269 = vmatpush1.msra.mxu0 %v81
    %270 = vmatprep.subr.mxu0 0.0
    %271 = vmatpush1.msra.mxu0 %v82
    %272 = vmatprep.subr.mxu0 0.0
    %273 = vmatpush1.msra.mxu0 %v83
    %274 = vmatprep.subr.mxu0 0.0
    %275 = vmatpush1.msra.mxu0 %v84
    %276 = vmatprep.subr.mxu0 0.0
    %277 = vmatpush1.msra.mxu0 %v85
    %278 = vmatprep.subr.mxu0 0.0
    %279 = vmatpush1.msra.mxu0 %v86
    %280 = vmatprep.subr.mxu0 0.0
    %281 = vmatpush1.msra.mxu0 %v87
    %282 = vmatprep.mubr.f32.mxu0 %v201
    %283 = vmatmul.mubr.f32.gmra.mrb[0].mxu0 %v200
    %v284 = vpop.f32.mrb[0].mxu0
    %v285 = vadd.f32 0.0, %v284
    %v286 = vpop.f32.mrb[0].mxu0
    %287 = vmatprep.mubr.f32.mxu0 %v210
    %288 = vmatmul.mubr.f32.gmra.mrb[0].mxu0 %v209
    %v289 = vpop.f32.mrb[0].mxu0
    %v290 = vadd.f32 0.0, %v289
    %v291 = vpop.f32.mrb[0].mxu0
    %292 = vdwg.mxu0
    %293 = vmatprep.subr.mxu0 0.0
    %294 = vmatpush1.msra.mxu0 %v88
    %295 = vmatprep.subr.mxu0 0.0
    %296 = vmatpush1.msra.mxu0 %v89
    %297 = vmatprep.subr.mxu0 0.0
    %298 = vmatpush1.msra.mxu0 %v90
    %299 = vmatprep.subr.mxu0 0.0
    %300 = vmatpush1.msra.mxu0 %v91
    %301 = vmatprep.subr.mxu0 0.0
    %302 = vmatpush1.msra.mxu0 %v92
    %303 = vmatprep.subr.mxu0 0.0
    %304 = vmatpush1.msra.mxu0 %v93
    %305 = vmatprep.subr.mxu0 0.0
    %306 = vmatpush1.msra.mxu0 %v94
    %307 = vmatprep.subr.mxu0 0.0
    %308 = vmatpush1.msra.mxu0 %v95
    %309 = vmatprep.subr.mxu0 0.0
    %310 = vmatpush1.msra.mxu0 %v96
    %311 = vmatprep.subr.mxu0 0.0
    %312 = vmatpush1.msra.mxu0 %v97
    %313 = vmatprep.subr.mxu0 0.0
    %314 = vmatpush1.msra.mxu0 %v98
    %315 = vmatprep.subr.mxu0 0.0
    %316 = vmatpush1.msra.mxu0 %v99
    %317 = vmatprep.subr.mxu0 0.0
    %318 = vmatpush1.msra.mxu0 %v100
    %319 = vmatprep.subr.mxu0 0.0
    %320 = vmatpush1.msra.mxu0 %v101
    %321 = vmatprep.subr.mxu0 0.0
    %322 = vmatpush1.msra.mxu0 %v102
    %323 = vmatprep.subr.mxu0 0.0
    %324 = vmatpush1.msra.mxu0 %v103
    %325 = vmatprep.subr.mxu0 0.0
    %326 = vmatpush1.msra.mxu0 %v104
    %327 = vmatprep.subr.mxu0 0.0
    %328 = vmatpush1.msra.mxu0 %v105
    %329 = vmatprep.subr.mxu0 0.0
    %330 = vmatpush1.msra.mxu0 %v106
    %331 = vmatprep.subr.mxu0 0.0
    %332 = vmatpush1.msra.mxu0 %v107
    %333 = vmatprep.subr.mxu0 0.0
    %334 = vmatpush1.msra.mxu0 %v108
    %335 = vmatprep.subr.mxu0 0.0
    %336 = vmatpush1.msra.mxu0 %v109
    %337 = vmatprep.subr.mxu0 0.0
    %338 = vmatpush1.msra.mxu0 %v110
    %339 = vmatprep.subr.mxu0 0.0
    %340 = vmatpush1.msra.mxu0 %v111
    %341 = vmatprep.subr.mxu0 0.0
    %342 = vmatpush1.msra.mxu0 %v112
    %343 = vmatprep.subr.mxu0 0.0
    %344 = vmatpush1.msra.mxu0 %v113
    %345 = vmatprep.subr.mxu0 0.0
    %346 = vmatpush1.msra.mxu0 %v114
    %347 = vmatprep.subr.mxu0 0.0
    %348 = vmatpush1.msra.mxu0 %v115
    %349 = vmatprep.subr.mxu0 0.0
    %350 = vmatpush1.msra.mxu0 %v116
    %351 = vmatprep.subr.mxu0 0.0
    %352 = vmatpush1.msra.mxu0 %v117
    %353 = vmatprep.subr.mxu0 0.0
    %354 = vmatpush1.msra.mxu0 %v118
    %355 = vmatprep.subr.mxu0 0.0
    %356 = vmatpush1.msra.mxu0 %v119
    %357 = vmatprep.mubr.f32.mxu0 %v203
    %358 = vmatmul.mubr.f32.gmra.mrb[0].mxu0 %v202
    %v359 = vpop.f32.mrb[0].mxu0
    %v360 = vadd.f32 %v285, %v359
    %v361 = vpop.f32.mrb[0].mxu0
    %362 = vmatprep.mubr.f32.mxu0 %v212
    %363 = vmatmul.mubr.f32.gmra.mrb[0].mxu0 %v211
    %v364 = vpop.f32.mrb[0].mxu0
    %v365 = vadd.f32 %v290, %v364
    %v366 = vpop.f32.mrb[0].mxu0
    %367 = vdwg.mxu0
    %368 = vmatprep.subr.mxu0 0.0
    %369 = vmatpush1.msra.mxu0 %v120
    %370 = vmatprep.subr.mxu0 0.0
    %371 = vmatpush1.msra.mxu0 %v121
    %372 = vmatprep.subr.mxu0 0.0
    %373 = vmatpush1.msra.mxu0 %v122
    %374 = vmatprep.subr.mxu0 0.0
    %375 = vmatpush1.msra.mxu0 %v123
    %376 = vmatprep.subr.mxu0 0.0
    %377 = vmatpush1.msra.mxu0 %v124
    %378 = vmatprep.subr.mxu0 0.0
    %379 = vmatpush1.msra.mxu0 %v125
    %380 = vmatprep.subr.mxu0 0.0
    %381 = vmatpush1.msra.mxu0 %v126
    %382 = vmatprep.subr.mxu0 0.0
    %383 = vmatpush1.msra.mxu0 %v127
    %384 = vmatprep.subr.mxu0 0.0
    %385 = vmatpush1.msra.mxu0 %v128
    %386 = vmatprep.subr.mxu0 0.0
    %387 = vmatpush1.msra.mxu0 %v129
    %388 = vmatprep.subr.mxu0 0.0
    %389 = vmatpush1.msra.mxu0 %v130
    %390 = vmatprep.subr.mxu0 0.0
    %391 = vmatpush1.msra.mxu0 %v131
    %392 = vmatprep.subr.mxu0 0.0
    %393 = vmatpush1.msra.mxu0 %v132
    %394 = vmatprep.subr.mxu0 0.0
    %395 = vmatpush1.msra.mxu0 %v133
    %396 = vmatprep.subr.mxu0 0.0
    %397 = vmatpush1.msra.mxu0 %v134
    %398 = vmatprep.subr.mxu0 0.0
    %399 = vmatpush1.msra.mxu0 %v135
    %400 = vmatprep.subr.mxu0 0.0
    %401 = vmatpush1.msra.mxu0 %v136
    %402 = vmatprep.subr.mxu0 0.0
    %403 = vmatpush1.msra.mxu0 %v137
    %404 = vmatprep.subr.mxu0 0.0
    %405 = vmatpush1.msra.mxu0 %v138
    %406 = vmatprep.subr.mxu0 0.0
    %407 = vmatpush1.msra.mxu0 %v139
    %408 = vmatprep.subr.mxu0 0.0
    %409 = vmatpush1.msra.mxu0 %v140
    %410 = vmatprep.subr.mxu0 0.0
    %411 = vmatpush1.msra.mxu0 %v141
    %412 = vmatprep.subr.mxu0 0.0
    %413 = vmatpush1.msra.mxu0 %v142
    %414 = vmatprep.subr.mxu0 0.0
    %415 = vmatpush1.msra.mxu0 %v143
    %416 = vmatprep.subr.mxu0 0.0
    %417 = vmatpush1.msra.mxu0 %v144
    %418 = vmatprep.subr.mxu0 0.0
    %419 = vmatpush1.msra.mxu0 %v145
    %420 = vmatprep.subr.mxu0 0.0
    %421 = vmatpush1.msra.mxu0 %v146
    %422 = vmatprep.subr.mxu0 0.0
    %423 = vmatpush1.msra.mxu0 %v147
    %424 = vmatprep.subr.mxu0 0.0
    %425 = vmatpush1.msra.mxu0 %v148
    %426 = vmatprep.subr.mxu0 0.0
    %427 = vmatpush1.msra.mxu0 %v149
    %428 = vmatprep.subr.mxu0 0.0
    %429 = vmatpush1.msra.mxu0 %v150
    %430 = vmatprep.subr.mxu0 0.0
    %431 = vmatpush1.msra.mxu0 %v151
    %432 = vmatprep.mubr.f32.mxu0 %v205
    %433 = vmatmul.mubr.f32.gmra.mrb[0].mxu0 %v204
    %v434 = vpop.f32.mrb[0].mxu0
    %v435 = vadd.f32 %v360, %v434
    %v436 = vpop.f32.mrb[0].mxu0
    %437 = vmatprep.mubr.f32.mxu0 %v214
    %438 = vmatmul.mubr.f32.gmra.mrb[0].mxu0 %v213
    %v439 = vpop.f32.mrb[0].mxu0
    %v440 = vadd.f32 %v365, %v439
    %v441 = vpop.f32.mrb[0].mxu0
    %442 = vdwg.mxu0
    %443 = vmatprep.subr.mxu0 0.0
    %444 = vmatpush1.msra.mxu0 %v152
    %445 = vmatprep.subr.mxu0 0.0
    %446 = vmatpush1.msra.mxu0 %v153
    %447 = vmatprep.subr.mxu0 0.0
    %448 = vmatpush1.msra.mxu0 %v154
    %449 = vmatprep.subr.mxu0 0.0
    %450 = vmatpush1.msra.mxu0 %v155
    %451 = vmatprep.subr.mxu0 0.0
    %452 = vmatpush1.msra.mxu0 %v156
    %453 = vmatprep.subr.mxu0 0.0
    %454 = vmatpush1.msra.mxu0 %v157
    %455 = vmatprep.subr.mxu0 0.0
    %456 = vmatpush1.msra.mxu0 %v158
    %457 = vmatprep.subr.mxu0 0.0
    %458 = vmatpush1.msra.mxu0 %v159
    %459 = vmatprep.subr.mxu0 0.0
    %460 = vmatpush1.msra.mxu0 %v160
    %461 = vmatprep.subr.mxu0 0.0
    %462 = vmatpush1.msra.mxu0 %v161
    %463 = vmatprep.subr.mxu0 0.0
    %464 = vmatpush1.msra.mxu0 %v162
    %465 = vmatprep.subr.mxu0 0.0
    %466 = vmatpush1.msra.mxu0 %v163
    %467 = vmatprep.subr.mxu0 0.0
    %468 = vmatpush1.msra.mxu0 %v164
    %469 = vmatprep.subr.mxu0 0.0
    %470 = vmatpush1.msra.mxu0 %v165
    %471 = vmatprep.subr.mxu0 0.0
    %472 = vmatpush1.msra.mxu0 %v166
    %473 = vmatprep.subr.mxu0 0.0
    %474 = vmatpush1.msra.mxu0 %v167
    %475 = vmatprep.subr.mxu0 0.0
    %476 = vmatpush1.msra.mxu0 %v168
    %477 = vmatprep.subr.mxu0 0.0
    %478 = vmatpush1.msra.mxu0 %v169
    %479 = vmatprep.subr.mxu0 0.0
    %480 = vmatpush1.msra.mxu0 %v170
    %481 = vmatprep.subr.mxu0 0.0
    %482 = vmatpush1.msra.mxu0 %v171
    %483 = vmatprep.subr.mxu0 0.0
    %484 = vmatpush1.msra.mxu0 %v172
    %485 = vmatprep.subr.mxu0 0.0
    %486 = vmatpush1.msra.mxu0 %v173
    %487 = vmatprep.subr.mxu0 0.0
    %488 = vmatpush1.msra.mxu0 %v174
    %489 = vmatprep.subr.mxu0 0.0
    %490 = vmatpush1.msra.mxu0 %v175
    %491 = vmatprep.subr.mxu0 0.0
    %492 = vmatpush1.msra.mxu0 %v176
    %493 = vmatprep.subr.mxu0 0.0
    %494 = vmatpush1.msra.mxu0 %v177
    %495 = vmatprep.subr.mxu0 0.0
    %496 = vmatpush1.msra.mxu0 %v178
    %497 = vmatprep.subr.mxu0 0.0
    %498 = vmatpush1.msra.mxu0 %v179
    %499 = vmatprep.subr.mxu0 0.0
    %500 = vmatpush1.msra.mxu0 %v180
    %501 = vmatprep.subr.mxu0 0.0
    %502 = vmatpush1.msra.mxu0 %v181
    %503 = vmatprep.subr.mxu0 0.0
    %504 = vmatpush1.msra.mxu0 %v182
    %505 = vmatprep.subr.mxu0 0.0
    %506 = vmatpush1.msra.mxu0 %v183
    %507 = vmatprep.mubr.f32.mxu0 %v207
    %508 = vmatmul.mubr.f32.gmra.mrb[0].mxu0 %v206
    %v509 = vpop.f32.mrb[0].mxu0
    %v510 = vadd.f32 %v435, %v509
    %v511 = vpop.f32.mrb[0].mxu0
    %512 = vmatprep.mubr.f32.mxu0 %v216
    %513 = vmatmul.mubr.f32.gmra.mrb[0].mxu0 %v215
    %v514 = vpop.f32.mrb[0].mxu0
    %v515 = vadd.f32 %v440, %v514
    %v516 = vpop.f32.mrb[0].mxu0
    %517 = vdwg.mxu0
    %518 = vmatprep.subr.mxu0 0.0
    %519 = vmatpush1.msra.mxu0 %v184
    %520 = vmatprep.subr.mxu0 0.0
    %521 = vmatpush1.msra.mxu0 %v185
    %522 = vmatprep.subr.mxu0 0.0
    %523 = vmatpush1.msra.mxu0 %v186
    %524 = vmatprep.subr.mxu0 0.0
    %525 = vmatpush1.msra.mxu0 %v187
    %526 = vmatprep.subr.mxu0 0.0
    %527 = vmatpush1.msra.mxu0 %v188
    %528 = vmatprep.subr.mxu0 0.0
    %529 = vmatpush1.msra.mxu0 %v189
    %530 = vmatprep.subr.mxu0 0.0
    %531 = vmatpush1.msra.mxu0 %v190
    %532 = vmatprep.subr.mxu0 0.0
    %533 = vmatpush1.msra.mxu0 %v191
    %534 = vmatprep.subr.mxu0 0.0
    %535 = vmatpush1.msra.mxu0 %v192
    %536 = vmatprep.subr.mxu0 0.0
    %537 = vmatpush1.msra.mxu0 %v193
    %538 = vmatprep.subr.mxu0 0.0
    %539 = vmatpush1.msra.mxu0 %v194
    %540 = vmatprep.subr.mxu0 0.0
    %541 = vmatpush1.msra.mxu0 %v195
    %542 = vmatprep.subr.mxu0 0.0
    %543 = vmatpush1.msra.mxu0 %v196
    %544 = vmatprep.subr.mxu0 0.0
    %545 = vmatpush1.msra.mxu0 %v197
    %546 = vmatprep.subr.mxu0 0.0
    %547 = vmatpush1.msra.mxu0 %v198
    %548 = vmatprep.subr.mxu0 0.0
    %549 = vmatpush1.msra.mxu0 %v199
    %550 = vmatprep.subr.mxu0 0.0
    %551 = vmatpush1.msra.mxu0 0.0
    %552 = vmatprep.subr.mxu0 0.0
    %553 = vmatpush1.msra.mxu0 0.0
    %554 = vmatprep.subr.mxu0 0.0
    %555 = vmatpush1.msra.mxu0 0.0
    %556 = vmatprep.subr.mxu0 0.0
    %557 = vmatpush1.msra.mxu0 0.0
    %558 = vmatprep.subr.mxu0 0.0
    %559 = vmatpush1.msra.mxu0 0.0
    %560 = vmatprep.subr.mxu0 0.0
    %561 = vmatpush1.msra.mxu0 0.0
    %562 = vmatprep.subr.mxu0 0.0
    %563 = vmatpush1.msra.mxu0 0.0
    %564 = vmatprep.subr.mxu0 0.0
    %565 = vmatpush1.msra.mxu0 0.0
    %566 = vmatprep.subr.mxu0 0.0
    %567 = vmatpush1.msra.mxu0 0.0
    %568 = vmatprep.subr.mxu0 0.0
    %569 = vmatpush1.msra.mxu0 0.0
    %570 = vmatprep.subr.mxu0 0.0
    %571 = vmatpush1.msra.mxu0 0.0
    %572 = vmatprep.subr.mxu0 0.0
    %573 = vmatpush1.msra.mxu0 0.0
    %574 = vmatprep.subr.mxu0 0.0
    %575 = vmatpush1.msra.mxu0 0.0
    %576 = vmatprep.subr.mxu0 0.0
    %577 = vmatpush1.msra.mxu0 0.0
    %578 = vmatprep.subr.mxu0 0.0
    %579 = vmatpush1.msra.mxu0 0.0
    %580 = vmatprep.subr.mxu0 0.0
    %581 = vmatpush1.msra.mxu0 0.0
    %582 = vmatprep.mubr.f32.mxu0 0.0
    %583 = vmatmul.mubr.f32.gmra.mrb[0].mxu0 %v208
    %v584 = vpop.f32.mrb[0].mxu0
    %v585 = vadd.f32 %v510, %v584
    %v586 = vpop.f32.mrb[0].mxu0
    %587 = vmatprep.mubr.f32.mxu0 0.0
    %588 = vmatmul.mubr.f32.gmra.mrb[0].mxu0 %v217
    %v589 = vpop.f32.mrb[0].mxu0
    %v590 = vadd.f32 %v515, %v589
    %v591 = vpop.f32.mrb[0].mxu0
    %592 = vdwg.mxu0
    %v593 = vmul.f32 %v585, 0.11111111
    %v594 = vmul.f32 %v590, 0.11111111
    %595 = vst [vmem:[#allocation8] sm:$0xff] %v593
    %596 = vst [vmem:[#allocation8 + $0x18] sm:$0xff] %v594
    %v597 = vld [vmem:[#allocation5] sm:$0xff]
    %v598 = vld [vmem:[#allocation5 + $0x8] sm:$0xff]
    %v599 = vld [vmem:[#allocation5 + $0x10] sm:$0xff]
    %v600 = vld [vmem:[#allocation5 + $0x18] sm:$0xff]
    %v601 = vld [vmem:[#allocation5 + $0x20] sm:$0xff]
    %v602 = vld [vmem:[#allocation5 + $0x28] sm:$0xff]
    %v603 = vld [vmem:[#allocation5 + $0x30] sm:$0xff]
    %v604 = vld [vmem:[#allocation5 + $0x38] sm:$0xff]
    %v605 = vld [vmem:[#allocation5 + $0x40] sm:$0xff]
    %v606 = vld [vmem:[#allocation5 + $0x90] sm:$0xff]
    %v607 = vld [vmem:[#allocation5 + $0x98] sm:$0xff]
    %v608 = vld [vmem:[#allocation5 + $0xa0] sm:$0xff]
    %v609 = vld [vmem:[#allocation5 + $0xa8] sm:$0xff]
    %v610 = vld [vmem:[#allocation5 + $0xb0] sm:$0xff]
    %v611 = vld [vmem:[#allocation5 + $0xb8] sm:$0xff]
    %v612 = vld [vmem:[#allocation5 + $0xc0] sm:$0xff]
    %v613 = vld [vmem:[#allocation5 + $0xc8] sm:$0xff]
    %v614 = vld [vmem:[#allocation5 + $0xd0] sm:$0xff]
    %615 = vmatprep.subr.mxu0 0.0
    %616 = vmatpush1.msra.mxu0 %v56
    %617 = vmatprep.subr.mxu0 0.0
    %618 = vmatpush1.msra.mxu0 %v57
    %619 = vmatprep.subr.mxu0 0.0
    %620 = vmatpush1.msra.mxu0 %v58
    %621 = vmatprep.subr.mxu0 0.0
    %622 = vmatpush1.msra.mxu0 %v59
    %623 = vmatprep.subr.mxu0 0.0
    %624 = vmatpush1.msra.mxu0 %v60
    %625 = vmatprep.subr.mxu0 0.0
    %626 = vmatpush1.msra.mxu0 %v61
    %627 = vmatprep.subr.mxu0 0.0
    %628 = vmatpush1.msra.mxu0 %v62
    %629 = vmatprep.subr.mxu0 0.0
    %630 = vmatpush1.msra.mxu0 %v63
    %631 = vmatprep.subr.mxu0 0.0
    %632 = vmatpush1.msra.mxu0 %v64
    %633 = vmatprep.subr.mxu0 0.0
    %634 = vmatpush1.msra.mxu0 %v65
    %635 = vmatprep.subr.mxu0 0.0
    %636 = vmatpush1.msra.mxu0 %v66
    %637 = vmatprep.subr.mxu0 0.0
    %638 = vmatpush1.msra.mxu0 %v67
    %639 = vmatprep.subr.mxu0 0.0
    %640 = vmatpush1.msra.mxu0 %v68
    %641 = vmatprep.subr.mxu0 0.0
    %642 = vmatpush1.msra.mxu0 %v69
    %643 = vmatprep.subr.mxu0 0.0
    %644 = vmatpush1.msra.mxu0 %v70
    %645 = vmatprep.subr.mxu0 0.0
    %646 = vmatpush1.msra.mxu0 %v71
    %647 = vmatprep.subr.mxu0 0.0
    %648 = vmatpush1.msra.mxu0 %v72
    %649 = vmatprep.subr.mxu0 0.0
    %650 = vmatpush1.msra.mxu0 %v73
    %651 = vmatprep.subr.mxu0 0.0
    %652 = vmatpush1.msra.mxu0 %v74
    %653 = vmatprep.subr.mxu0 0.0
    %654 = vmatpush1.msra.mxu0 %v75
    %655 = vmatprep.subr.mxu0 0.0
    %656 = vmatpush1.msra.mxu0 %v76
    %657 = vmatprep.subr.mxu0 0.0
    %658 = vmatpush1.msra.mxu0 %v77
    %659 = vmatprep.subr.mxu0 0.0
    %660 = vmatpush1.msra.mxu0 %v78
    %661 = vmatprep.subr.mxu0 0.0
    %662 = vmatpush1.msra.mxu0 %v79
    %663 = vmatprep.subr.mxu0 0.0
    %664 = vmatpush1.msra.mxu0 %v80
    %665 = vmatprep.subr.mxu0 0.0
    %666 = vmatpush1.msra.mxu0 %v81
    %667 = vmatprep.subr.mxu0 0.0
    %668 = vmatpush1.msra.mxu0 %v82
    %669 = vmatprep.subr.mxu0 0.0
    %670 = vmatpush1.msra.mxu0 %v83
    %671 = vmatprep.subr.mxu0 0.0
    %672 = vmatpush1.msra.mxu0 %v84
    %673 = vmatprep.subr.mxu0 0.0
    %674 = vmatpush1.msra.mxu0 %v85
    %675 = vmatprep.subr.mxu0 0.0
    %676 = vmatpush1.msra.mxu0 %v86
    %677 = vmatprep.subr.mxu0 0.0
    %678 = vmatpush1.msra.mxu0 %v87
    %679 = vmatprep.mubr.f32.mxu0 %v598
    %680 = vmatmul.mubr.f32.gmra.mrb[0].mxu0 %v597
    %v681 = vpop.f32.mrb[0].mxu0
    %v682 = vadd.f32 0.0, %v681
    %v683 = vpop.f32.mrb[0].mxu0
    %684 = vmatprep.mubr.f32.mxu0 %v607
    %685 = vmatmul.mubr.f32.gmra.mrb[0].mxu0 %v606
    %v686 = vpop.f32.mrb[0].mxu0
    %v687 = vadd.f32 0.0, %v686
    %v688 = vpop.f32.mrb[0].mxu0
    %689 = vdwg.mxu0
    %690 = vmatprep.subr.mxu0 0.0
    %691 = vmatpush1.msra.mxu0 %v88
    %692 = vmatprep.subr.mxu0 0.0
    %693 = vmatpush1.msra.mxu0 %v89
    %694 = vmatprep.subr.mxu0 0.0
    %695 = vmatpush1.msra.mxu0 %v90
    %696 = vmatprep.subr.mxu0 0.0
    %697 = vmatpush1.msra.mxu0 %v91
    %698 = vmatprep.subr.mxu0 0.0
    %699 = vmatpush1.msra.mxu0 %v92
    %700 = vmatprep.subr.mxu0 0.0
    %701 = vmatpush1.msra.mxu0 %v93
    %702 = vmatprep.subr.mxu0 0.0
    %703 = vmatpush1.msra.mxu0 %v94
    %704 = vmatprep.subr.mxu0 0.0
    %705 = vmatpush1.msra.mxu0 %v95
    %706 = vmatprep.subr.mxu0 0.0
    %707 = vmatpush1.msra.mxu0 %v96
    %708 = vmatprep.subr.mxu0 0.0
    %709 = vmatpush1.msra.mxu0 %v97
    %710 = vmatprep.subr.mxu0 0.0
    %711 = vmatpush1.msra.mxu0 %v98
    %712 = vmatprep.subr.mxu0 0.0
    %713 = vmatpush1.msra.mxu0 %v99
    %714 = vmatprep.subr.mxu0 0.0
    %715 = vmatpush1.msra.mxu0 %v100
    %716 = vmatprep.subr.mxu0 0.0
    %717 = vmatpush1.msra.mxu0 %v101
    %718 = vmatprep.subr.mxu0 0.0
    %719 = vmatpush1.msra.mxu0 %v102
    %720 = vmatprep.subr.mxu0 0.0
    %721 = vmatpush1.msra.mxu0 %v103
    %722 = vmatprep.subr.mxu0 0.0
    %723 = vmatpush1.msra.mxu0 %v104
    %724 = vmatprep.subr.mxu0 0.0
    %725 = vmatpush1.msra.mxu0 %v105
    %726 = vmatprep.subr.mxu0 0.0
    %727 = vmatpush1.msra.mxu0 %v106
    %728 = vmatprep.subr.mxu0 0.0
    %729 = vmatpush1.msra.mxu0 %v107
    %730 = vmatprep.subr.mxu0 0.0
    %731 = vmatpush1.msra.mxu0 %v108
    %732 = vmatprep.subr.mxu0 0.0
    %733 = vmatpush1.msra.mxu0 %v109
    %734 = vmatprep.subr.mxu0 0.0
    %735 = vmatpush1.msra.mxu0 %v110
    %736 = vmatprep.subr.mxu0 0.0
    %737 = vmatpush1.msra.mxu0 %v111
    %738 = vmatprep.subr.mxu0 0.0
    %739 = vmatpush1.msra.mxu0 %v112
    %740 = vmatprep.subr.mxu0 0.0
    %741 = vmatpush1.msra.mxu0 %v113
    %742 = vmatprep.subr.mxu0 0.0
    %743 = vmatpush1.msra.mxu0 %v114
    %744 = vmatprep.subr.mxu0 0.0
    %745 = vmatpush1.msra.mxu0 %v115
    %746 = vmatprep.subr.mxu0 0.0
    %747 = vmatpush1.msra.mxu0 %v116
    %748 = vmatprep.subr.mxu0 0.0
    %749 = vmatpush1.msra.mxu0 %v117
    %750 = vmatprep.subr.mxu0 0.0
    %751 = vmatpush1.msra.mxu0 %v118
    %752 = vmatprep.subr.mxu0 0.0
    %753 = vmatpush1.msra.mxu0 %v119
    %754 = vmatprep.mubr.f32.mxu0 %v600
    %755 = vmatmul.mubr.f32.gmra.mrb[0].mxu0 %v599
    %v756 = vpop.f32.mrb[0].mxu0
    %v757 = vadd.f32 %v682, %v756
    %v758 = vpop.f32.mrb[0].mxu0
    %759 = vmatprep.mubr.f32.mxu0 %v609
    %760 = vmatmul.mubr.f32.gmra.mrb[0].mxu0 %v608
    %v761 = vpop.f32.mrb[0].mxu0
    %v762 = vadd.f32 %v687, %v761
    %v763 = vpop.f32.mrb[0].mxu0
    %764 = vdwg.mxu0
    %765 = vmatprep.subr.mxu0 0.0
    %766 = vmatpush1.msra.mxu0 %v120
    %767 = vmatprep.subr.mxu0 0.0
    %768 = vmatpush1.msra.mxu0 %v121
    %769 = vmatprep.subr.mxu0 0.0
    %770 = vmatpush1.msra.mxu0 %v122
    %771 = vmatprep.subr.mxu0 0.0
    %772 = vmatpush1.msra.mxu0 %v123
    %773 = vmatprep.subr.mxu0 0.0
    %774 = vmatpush1.msra.mxu0 %v124
    %775 = vmatprep.subr.mxu0 0.0
    %776 = vmatpush1.msra.mxu0 %v125
    %777 = vmatprep.subr.mxu0 0.0
    %778 = vmatpush1.msra.mxu0 %v126
    %779 = vmatprep.subr.mxu0 0.0
    %780 = vmatpush1.msra.mxu0 %v127
    %781 = vmatprep.subr.mxu0 0.0
    %782 = vmatpush1.msra.mxu0 %v128
    %783 = vmatprep.subr.mxu0 0.0
    %784 = vmatpush1.msra.mxu0 %v129
    %785 = vmatprep.subr.mxu0 0.0
    %786 = vmatpush1.msra.mxu0 %v130
    %787 = vmatprep.subr.mxu0 0.0
    %788 = vmatpush1.msra.mxu0 %v131
    %789 = vmatprep.subr.mxu0 0.0
    %790 = vmatpush1.msra.mxu0 %v132
    %791 = vmatprep.subr.mxu0 0.0
    %792 = vmatpush1.msra.mxu0 %v133
    %793 = vmatprep.subr.mxu0 0.0
    %794 = vmatpush1.msra.mxu0 %v134
    %795 = vmatprep.subr.mxu0 0.0
    %796 = vmatpush1.msra.mxu0 %v135
    %797 = vmatprep.subr.mxu0 0.0
    %798 = vmatpush1.msra.mxu0 %v136
    %799 = vmatprep.subr.mxu0 0.0
    %800 = vmatpush1.msra.mxu0 %v137
    %801 = vmatprep.subr.mxu0 0.0
    %802 = vmatpush1.msra.mxu0 %v138
    %803 = vmatprep.subr.mxu0 0.0
    %804 = vmatpush1.msra.mxu0 %v139
    %805 = vmatprep.subr.mxu0 0.0
    %806 = vmatpush1.msra.mxu0 %v140
    %807 = vmatprep.subr.mxu0 0.0
    %808 = vmatpush1.msra.mxu0 %v141
    %809 = vmatprep.subr.mxu0 0.0
    %810 = vmatpush1.msra.mxu0 %v142
    %811 = vmatprep.subr.mxu0 0.0
    %812 = vmatpush1.msra.mxu0 %v143
    %813 = vmatprep.subr.mxu0 0.0
    %814 = vmatpush1.msra.mxu0 %v144
    %815 = vmatprep.subr.mxu0 0.0
    %816 = vmatpush1.msra.mxu0 %v145
    %817 = vmatprep.subr.mxu0 0.0
    %818 = vmatpush1.msra.mxu0 %v146
    %819 = vmatprep.subr.mxu0 0.0
    %820 = vmatpush1.msra.mxu0 %v147
    %821 = vmatprep.subr.mxu0 0.0
    %822 = vmatpush1.msra.mxu0 %v148
    %823 = vmatprep.subr.mxu0 0.0
    %824 = vmatpush1.msra.mxu0 %v149
    %825 = vmatprep.subr.mxu0 0.0
    %826 = vmatpush1.msra.mxu0 %v150
    %827 = vmatprep.subr.mxu0 0.0
    %828 = vmatpush1.msra.mxu0 %v151
    %829 = vmatprep.mubr.f32.mxu0 %v602
    %830 = vmatmul.mubr.f32.gmra.mrb[0].mxu0 %v601
    %v831 = vpop.f32.mrb[0].mxu0
    %v832 = vadd.f32 %v757, %v831
    %v833 = vpop.f32.mrb[0].mxu0
    %834 = vmatprep.mubr.f32.mxu0 %v611
    %835 = vmatmul.mubr.f32.gmra.mrb[0].mxu0 %v610
    %v836 = vpop.f32.mrb[0].mxu0
    %v837 = vadd.f32 %v762, %v836
    %v838 = vpop.f32.mrb[0].mxu0
    %839 = vdwg.mxu0
    %840 = vmatprep.subr.mxu0 0.0
    %841 = vmatpush1.msra.mxu0 %v152
    %842 = vmatprep.subr.mxu0 0.0
    %843 = vmatpush1.msra.mxu0 %v153
    %844 = vmatprep.subr.mxu0 0.0
    %845 = vmatpush1.msra.mxu0 %v154
    %846 = vmatprep.subr.mxu0 0.0
    %847 = vmatpush1.msra.mxu0 %v155
    %848 = vmatprep.subr.mxu0 0.0
    %849 = vmatpush1.msra.mxu0 %v156
    %850 = vmatprep.subr.mxu0 0.0
    %851 = vmatpush1.msra.mxu0 %v157
    %852 = vmatprep.subr.mxu0 0.0
    %853 = vmatpush1.msra.mxu0 %v158
    %854 = vmatprep.subr.mxu0 0.0
    %855 = vmatpush1.msra.mxu0 %v159
    %856 = vmatprep.subr.mxu0 0.0
    %857 = vmatpush1.msra.mxu0 %v160
    %858 = vmatprep.subr.mxu0 0.0
    %859 = vmatpush1.msra.mxu0 %v161
    %860 = vmatprep.subr.mxu0 0.0
    %861 = vmatpush1.msra.mxu0 %v162
    %862 = vmatprep.subr.mxu0 0.0
    %863 = vmatpush1.msra.mxu0 %v163
    %864 = vmatprep.subr.mxu0 0.0
    %865 = vmatpush1.msra.mxu0 %v164
    %866 = vmatprep.subr.mxu0 0.0
    %867 = vmatpush1.msra.mxu0 %v165
    %868 = vmatprep.subr.mxu0 0.0
    %869 = vmatpush1.msra.mxu0 %v166
    %870 = vmatprep.subr.mxu0 0.0
    %871 = vmatpush1.msra.mxu0 %v167
    %872 = vmatprep.subr.mxu0 0.0
    %873 = vmatpush1.msra.mxu0 %v168
    %874 = vmatprep.subr.mxu0 0.0
    %875 = vmatpush1.msra.mxu0 %v169
    %876 = vmatprep.subr.mxu0 0.0
    %877 = vmatpush1.msra.mxu0 %v170
    %878 = vmatprep.subr.mxu0 0.0
    %879 = vmatpush1.msra.mxu0 %v171
    %880 = vmatprep.subr.mxu0 0.0
    %881 = vmatpush1.msra.mxu0 %v172
    %882 = vmatprep.subr.mxu0 0.0
    %883 = vmatpush1.msra.mxu0 %v173
    %884 = vmatprep.subr.mxu0 0.0
    %885 = vmatpush1.msra.mxu0 %v174
    %886 = vmatprep.subr.mxu0 0.0
    %887 = vmatpush1.msra.mxu0 %v175
    %888 = vmatprep.subr.mxu0 0.0
    %889 = vmatpush1.msra.mxu0 %v176
    %890 = vmatprep.subr.mxu0 0.0
    %891 = vmatpush1.msra.mxu0 %v177
    %892 = vmatprep.subr.mxu0 0.0
    %893 = vmatpush1.msra.mxu0 %v178
    %894 = vmatprep.subr.mxu0 0.0
    %895 = vmatpush1.msra.mxu0 %v179
    %896 = vmatprep.subr.mxu0 0.0
    %897 = vmatpush1.msra.mxu0 %v180
    %898 = vmatprep.subr.mxu0 0.0
    %899 = vmatpush1.msra.mxu0 %v181
    %900 = vmatprep.subr.mxu0 0.0
    %901 = vmatpush1.msra.mxu0 %v182
    %902 = vmatprep.subr.mxu0 0.0
    %903 = vmatpush1.msra.mxu0 %v183
    %904 = vmatprep.mubr.f32.mxu0 %v604
    %905 = vmatmul.mubr.f32.gmra.mrb[0].mxu0 %v603
    %v906 = vpop.f32.mrb[0].mxu0
    %v907 = vadd.f32 %v832, %v906
    %v908 = vpop.f32.mrb[0].mxu0
    %909 = vmatprep.mubr.f32.mxu0 %v613
    %910 = vmatmul.mubr.f32.gmra.mrb[0].mxu0 %v612
    %v911 = vpop.f32.mrb[0].mxu0
    %v912 = vadd.f32 %v837, %v911
    %v913 = vpop.f32.mrb[0].mxu0
    %914 = vdwg.mxu0
    %915 = vmatprep.subr.mxu0 0.0
    %916 = vmatpush1.msra.mxu0 %v184
    %917 = vmatprep.subr.mxu0 0.0
    %918 = vmatpush1.msra.mxu0 %v185
    %919 = vmatprep.subr.mxu0 0.0
    %920 = vmatpush1.msra.mxu0 %v186
    %921 = vmatprep.subr.mxu0 0.0
    %922 = vmatpush1.msra.mxu0 %v187
    %923 = vmatprep.subr.mxu0 0.0
    %924 = vmatpush1.msra.mxu0 %v188
    %925 = vmatprep.subr.mxu0 0.0
    %926 = vmatpush1.msra.mxu0 %v189
    %927 = vmatprep.subr.mxu0 0.0
    %928 = vmatpush1.msra.mxu0 %v190
    %929 = vmatprep.subr.mxu0 0.0
    %930 = vmatpush1.msra.mxu0 %v191
    %931 = vmatprep.subr.mxu0 0.0
    %932 = vmatpush1.msra.mxu0 %v192
    %933 = vmatprep.subr.mxu0 0.0
    %934 = vmatpush1.msra.mxu0 %v193
    %935 = vmatprep.subr.mxu0 0.0
    %936 = vmatpush1.msra.mxu0 %v194
    %937 = vmatprep.subr.mxu0 0.0
    %938 = vmatpush1.msra.mxu0 %v195
    %939 = vmatprep.subr.mxu0 0.0
    %940 = vmatpush1.msra.mxu0 %v196
    %941 = vmatprep.subr.mxu0 0.0
    %942 = vmatpush1.msra.mxu0 %v197
    %943 = vmatprep.subr.mxu0 0.0
    %944 = vmatpush1.msra.mxu0 %v198
    %945 = vmatprep.subr.mxu0 0.0
    %946 = vmatpush1.msra.mxu0 %v199
    %947 = vmatprep.subr.mxu0 0.0
    %948 = vmatpush1.msra.mxu0 0.0
    %949 = vmatprep.subr.mxu0 0.0
    %950 = vmatpush1.msra.mxu0 0.0
    %951 = vmatprep.subr.mxu0 0.0
    %952 = vmatpush1.msra.mxu0 0.0
    %953 = vmatprep.subr.mxu0 0.0
    %954 = vmatpush1.msra.mxu0 0.0
    %955 = vmatprep.subr.mxu0 0.0
    %956 = vmatpush1.msra.mxu0 0.0
    %957 = vmatprep.subr.mxu0 0.0
    %958 = vmatpush1.msra.mxu0 0.0
    %959 = vmatprep.subr.mxu0 0.0
    %960 = vmatpush1.msra.mxu0 0.0
    %961 = vmatprep.subr.mxu0 0.0
    %962 = vmatpush1.msra.mxu0 0.0
    %963 = vmatprep.subr.mxu0 0.0
    %964 = vmatpush1.msra.mxu0 0.0
    %965 = vmatprep.subr.mxu0 0.0
    %966 = vmatpush1.msra.mxu0 0.0
    %967 = vmatprep.subr.mxu0 0.0
    %968 = vmatpush1.msra.mxu0 0.0
    %969 = vmatprep.subr.mxu0 0.0
    %970 = vmatpush1.msra.mxu0 0.0
    %971 = vmatprep.subr.mxu0 0.0
    %972 = vmatpush1.msra.mxu0 0.0
    %973 = vmatprep.subr.mxu0 0.0
    %974 = vmatpush1.msra.mxu0 0.0
    %975 = vmatprep.subr.mxu0 0.0
    %976 = vmatpush1.msra.mxu0 0.0
    %977 = vmatprep.subr.mxu0 0.0
    %978 = vmatpush1.msra.mxu0 0.0
    %979 = vmatprep.mubr.f32.mxu0 0.0
    %980 = vmatmul.mubr.f32.gmra.mrb[0].mxu0 %v605
    %v981 = vpop.f32.mrb[0].mxu0
    %v982 = vadd.f32 %v907, %v981
    %v983 = vpop.f32.mrb[0].mxu0
    %984 = vmatprep.mubr.f32.mxu0 0.0
    %985 = vmatmul.mubr.f32.gmra.mrb[0].mxu0 %v614
    %v986 = vpop.f32.mrb[0].mxu0
    %v987 = vadd.f32 %v912, %v986
    %v988 = vpop.f32.mrb[0].mxu0
    %989 = vdwg.mxu0
    %v990 = vmul.f32 %v982, 0.11111111
    %v991 = vmul.f32 %v987, 0.11111111
    %992 = vst [vmem:[#allocation8 + $0x8] sm:$0xff] %v990
    %993 = vst [vmem:[#allocation8 + $0x20] sm:$0xff] %v991
    %v994 = vld [vmem:[#allocation5 + $0x48] sm:$0xff]
    %v995 = vld [vmem:[#allocation5 + $0x50] sm:$0xff]
    %v996 = vld [vmem:[#allocation5 + $0x58] sm:$0xff]
    %v997 = vld [vmem:[#allocation5 + $0x60] sm:$0xff]
    %v998 = vld [vmem:[#allocation5 + $0x68] sm:$0xff]
    %v999 = vld [vmem:[#allocation5 + $0x70] sm:$0xff]
    %v1000 = vld [vmem:[#allocation5 + $0x78] sm:$0xff]
    %v1001 = vld [vmem:[#allocation5 + $0x80] sm:$0xff]
    %v1002 = vld [vmem:[#allocation5 + $0x88] sm:$0xff]
    %v1003 = vld [vmem:[#allocation5 + $0xd8] sm:$0xff]
    %v1004 = vld [vmem:[#allocation5 + $0xe0] sm:$0xff]
    %v1005 = vld [vmem:[#allocation5 + $0xe8] sm:$0xff]
    %v1006 = vld [vmem:[#allocation5 + $0xf0] sm:$0xff]
    %v1007 = vld [vmem:[#allocation5 + $0xf8] sm:$0xff]
    %v1008 = vld [vmem:[#allocation5 + $0x100] sm:$0xff]
    %v1009 = vld [vmem:[#allocation5 + $0x108] sm:$0xff]
    %v1010 = vld [vmem:[#allocation5 + $0x110] sm:$0xff]
    %v1011 = vld [vmem:[#allocation5 + $0x118] sm:$0xff]
    %1012 = vmatprep.subr.mxu0 0.0
    %1013 = vmatpush1.msra.mxu0 %v56
    %1014 = vmatprep.subr.mxu0 0.0
    %1015 = vmatpush1.msra.mxu0 %v57
    %1016 = vmatprep.subr.mxu0 0.0
    %1017 = vmatpush1.msra.mxu0 %v58
    %1018 = vmatprep.subr.mxu0 0.0
    %1019 = vmatpush1.msra.mxu0 %v59
    %1020 = vmatprep.subr.mxu0 0.0
    %1021 = vmatpush1.msra.mxu0 %v60
    %1022 = vmatprep.subr.mxu0 0.0
    %1023 = vmatpush1.msra.mxu0 %v61
    %1024 = vmatprep.subr.mxu0 0.0
    %1025 = vmatpush1.msra.mxu0 %v62
    %1026 = vmatprep.subr.mxu0 0.0
    %1027 = vmatpush1.msra.mxu0 %v63
    %1028 = vmatprep.subr.mxu0 0.0
    %1029 = vmatpush1.msra.mxu0 %v64
    %1030 = vmatprep.subr.mxu0 0.0
    %1031 = vmatpush1.msra.mxu0 %v65
    %1032 = vmatprep.subr.mxu0 0.0
    %1033 = vmatpush1.msra.mxu0 %v66
    %1034 = vmatprep.subr.mxu0 0.0
    %1035 = vmatpush1.msra.mxu0 %v67
    %1036 = vmatprep.subr.mxu0 0.0
    %1037 = vmatpush1.msra.mxu0 %v68
    %1038 = vmatprep.subr.mxu0 0.0
    %1039 = vmatpush1.msra.mxu0 %v69
    %1040 = vmatprep.subr.mxu0 0.0
    %1041 = vmatpush1.msra.mxu0 %v70
    %1042 = vmatprep.subr.mxu0 0.0
    %1043 = vmatpush1.msra.mxu0 %v71
    %1044 = vmatprep.subr.mxu0 0.0
    %1045 = vmatpush1.msra.mxu0 %v72
    %1046 = vmatprep.subr.mxu0 0.0
    %1047 = vmatpush1.msra.mxu0 %v73
    %1048 = vmatprep.subr.mxu0 0.0
    %1049 = vmatpush1.msra.mxu0 %v74
    %1050 = vmatprep.subr.mxu0 0.0
    %1051 = vmatpush1.msra.mxu0 %v75
    %1052 = vmatprep.subr.mxu0 0.0
    %1053 = vmatpush1.msra.mxu0 %v76
    %1054 = vmatprep.subr.mxu0 0.0
    %1055 = vmatpush1.msra.mxu0 %v77
    %1056 = vmatprep.subr.mxu0 0.0
    %1057 = vmatpush1.msra.mxu0 %v78
    %1058 = vmatprep.subr.mxu0 0.0
    %1059 = vmatpush1.msra.mxu0 %v79
    %1060 = vmatprep.subr.mxu0 0.0
    %1061 = vmatpush1.msra.mxu0 %v80
    %1062 = vmatprep.subr.mxu0 0.0
    %1063 = vmatpush1.msra.mxu0 %v81
    %1064 = vmatprep.subr.mxu0 0.0
    %1065 = vmatpush1.msra.mxu0 %v82
    %1066 = vmatprep.subr.mxu0 0.0
    %1067 = vmatpush1.msra.mxu0 %v83
    %1068 = vmatprep.subr.mxu0 0.0
    %1069 = vmatpush1.msra.mxu0 %v84
    %1070 = vmatprep.subr.mxu0 0.0
    %1071 = vmatpush1.msra.mxu0 %v85
    %1072 = vmatprep.subr.mxu0 0.0
    %1073 = vmatpush1.msra.mxu0 %v86
    %1074 = vmatprep.subr.mxu0 0.0
    %1075 = vmatpush1.msra.mxu0 %v87
    %1076 = vmatprep.mubr.f32.mxu0 %v995
    %1077 = vmatmul.mubr.f32.gmra.mrb[0].mxu0 %v994
    %v1078 = vpop.f32.mrb[0].mxu0
    %v1079 = vadd.f32 0.0, %v1078
    %v1080 = vpop.f32.mrb[0].mxu0
    %1081 = vmatprep.mubr.f32.mxu0 %v1004
    %1082 = vmatmul.mubr.f32.gmra.mrb[0].mxu0 %v1003
    %v1083 = vpop.f32.mrb[0].mxu0
    %v1084 = vadd.f32 0.0, %v1083
    %v1085 = vpop.f32.mrb[0].mxu0
    %1086 = vdwg.mxu0
    %1087 = vmatprep.subr.mxu0 0.0
    %1088 = vmatpush1.msra.mxu0 %v88
    %1089 = vmatprep.subr.mxu0 0.0
    %1090 = vmatpush1.msra.mxu0 %v89
    %1091 = vmatprep.subr.mxu0 0.0
    %1092 = vmatpush1.msra.mxu0 %v90
    %1093 = vmatprep.subr.mxu0 0.0
    %1094 = vmatpush1.msra.mxu0 %v91
    %1095 = vmatprep.subr.mxu0 0.0
    %1096 = vmatpush1.msra.mxu0 %v92
    %1097 = vmatprep.subr.mxu0 0.0
    %1098 = vmatpush1.msra.mxu0 %v93
    %1099 = vmatprep.subr.mxu0 0.0
    %1100 = vmatpush1.msra.mxu0 %v94
    %1101 = vmatprep.subr.mxu0 0.0
    %1102 = vmatpush1.msra.mxu0 %v95
    %1103 = vmatprep.subr.mxu0 0.0
    %1104 = vmatpush1.msra.mxu0 %v96
    %1105 = vmatprep.subr.mxu0 0.0
    %1106 = vmatpush1.msra.mxu0 %v97
    %1107 = vmatprep.subr.mxu0 0.0
    %1108 = vmatpush1.msra.mxu0 %v98
    %1109 = vmatprep.subr.mxu0 0.0
    %1110 = vmatpush1.msra.mxu0 %v99
    %1111 = vmatprep.subr.mxu0 0.0
    %1112 = vmatpush1.msra.mxu0 %v100
    %1113 = vmatprep.subr.mxu0 0.0
    %1114 = vmatpush1.msra.mxu0 %v101
    %1115 = vmatprep.subr.mxu0 0.0
    %1116 = vmatpush1.msra.mxu0 %v102
    %1117 = vmatprep.subr.mxu0 0.0
    %1118 = vmatpush1.msra.mxu0 %v103
    %1119 = vmatprep.subr.mxu0 0.0
    %1120 = vmatpush1.msra.mxu0 %v104
    %1121 = vmatprep.subr.mxu0 0.0
    %1122 = vmatpush1.msra.mxu0 %v105
    %1123 = vmatprep.subr.mxu0 0.0
    %1124 = vmatpush1.msra.mxu0 %v106
    %1125 = vmatprep.subr.mxu0 0.0
    %1126 = vmatpush1.msra.mxu0 %v107
    %1127 = vmatprep.subr.mxu0 0.0
    %1128 = vmatpush1.msra.mxu0 %v108
    %1129 = vmatprep.subr.mxu0 0.0
    %1130 = vmatpush1.msra.mxu0 %v109
    %1131 = vmatprep.subr.mxu0 0.0
    %1132 = vmatpush1.msra.mxu0 %v110
    %1133 = vmatprep.subr.mxu0 0.0
    %1134 = vmatpush1.msra.mxu0 %v111
    %1135 = vmatprep.subr.mxu0 0.0
    %1136 = vmatpush1.msra.mxu0 %v112
    %1137 = vmatprep.subr.mxu0 0.0
    %1138 = vmatpush1.msra.mxu0 %v113
    %1139 = vmatprep.subr.mxu0 0.0
    %1140 = vmatpush1.msra.mxu0 %v114
    %1141 = vmatprep.subr.mxu0 0.0
    %1142 = vmatpush1.msra.mxu0 %v115
    %1143 = vmatprep.subr.mxu0 0.0
    %1144 = vmatpush1.msra.mxu0 %v116
    %1145 = vmatprep.subr.mxu0 0.0
    %1146 = vmatpush1.msra.mxu0 %v117
    %1147 = vmatprep.subr.mxu0 0.0
    %1148 = vmatpush1.msra.mxu0 %v118
    %1149 = vmatprep.subr.mxu0 0.0
    %1150 = vmatpush1.msra.mxu0 %v119
    %1151 = vmatprep.mubr.f32.mxu0 %v997
    %1152 = vmatmul.mubr.f32.gmra.mrb[0].mxu0 %v996
    %v1153 = vpop.f32.mrb[0].mxu0
    %v1154 = vadd.f32 %v1079, %v1153
    %v1155 = vpop.f32.mrb[0].mxu0
    %1156 = vmatprep.mubr.f32.mxu0 %v1006
    %1157 = vmatmul.mubr.f32.gmra.mrb[0].mxu0 %v1005
    %v1158 = vpop.f32.mrb[0].mxu0
    %v1159 = vadd.f32 %v1084, %v1158
    %v1160 = vpop.f32.mrb[0].mxu0
    %1161 = vdwg.mxu0
    %1162 = vmatprep.subr.mxu0 0.0
    %1163 = vmatpush1.msra.mxu0 %v120
    %1164 = vmatprep.subr.mxu0 0.0
    %1165 = vmatpush1.msra.mxu0 %v121
    %1166 = vmatprep.subr.mxu0 0.0
    %1167 = vmatpush1.msra.mxu0 %v122
    %1168 = vmatprep.subr.mxu0 0.0
    %1169 = vmatpush1.msra.mxu0 %v123
    %1170 = vmatprep.subr.mxu0 0.0
    %1171 = vmatpush1.msra.mxu0 %v124
    %1172 = vmatprep.subr.mxu0 0.0
    %1173 = vmatpush1.msra.mxu0 %v125
    %1174 = vmatprep.subr.mxu0 0.0
    %1175 = vmatpush1.msra.mxu0 %v126
    %1176 = vmatprep.subr.mxu0 0.0
    %1177 = vmatpush1.msra.mxu0 %v127
    %1178 = vmatprep.subr.mxu0 0.0
    %1179 = vmatpush1.msra.mxu0 %v128
    %1180 = vmatprep.subr.mxu0 0.0
    %1181 = vmatpush1.msra.mxu0 %v129
    %1182 = vmatprep.subr.mxu0 0.0
    %1183 = vmatpush1.msra.mxu0 %v130
    %1184 = vmatprep.subr.mxu0 0.0
    %1185 = vmatpush1.msra.mxu0 %v131
    %1186 = vmatprep.subr.mxu0 0.0
    %1187 = vmatpush1.msra.mxu0 %v132
    %1188 = vmatprep.subr.mxu0 0.0
    %1189 = vmatpush1.msra.mxu0 %v133
    %1190 = vmatprep.subr.mxu0 0.0
    %1191 = vmatpush1.msra.mxu0 %v134
    %1192 = vmatprep.subr.mxu0 0.0
    %1193 = vmatpush1.msra.mxu0 %v135
    %1194 = vmatprep.subr.mxu0 0.0
    %1195 = vmatpush1.msra.mxu0 %v136
    %1196 = vmatprep.subr.mxu0 0.0
    %1197 = vmatpush1.msra.mxu0 %v137
    %1198 = vmatprep.subr.mxu0 0.0
    %1199 = vmatpush1.msra.mxu0 %v138
    %1200 = vmatprep.subr.mxu0 0.0
    %1201 = vmatpush1.msra.mxu0 %v139
    %1202 = vmatprep.subr.mxu0 0.0
    %1203 = vmatpush1.msra.mxu0 %v140
    %1204 = vmatprep.subr.mxu0 0.0
    %1205 = vmatpush1.msra.mxu0 %v141
    %1206 = vmatprep.subr.mxu0 0.0
    %1207 = vmatpush1.msra.mxu0 %v142
    %1208 = vmatprep.subr.mxu0 0.0
    %1209 = vmatpush1.msra.mxu0 %v143
    %1210 = vmatprep.subr.mxu0 0.0
    %1211 = vmatpush1.msra.mxu0 %v144
    %1212 = vmatprep.subr.mxu0 0.0
    %1213 = vmatpush1.msra.mxu0 %v145
    %1214 = vmatprep.subr.mxu0 0.0
    %1215 = vmatpush1.msra.mxu0 %v146
    %1216 = vmatprep.subr.mxu0 0.0
    %1217 = vmatpush1.msra.mxu0 %v147
    %1218 = vmatprep.subr.mxu0 0.0
    %1219 = vmatpush1.msra.mxu0 %v148
    %1220 = vmatprep.subr.mxu0 0.0
    %1221 = vmatpush1.msra.mxu0 %v149
    %1222 = vmatprep.subr.mxu0 0.0
    %1223 = vmatpush1.msra.mxu0 %v150
    %1224 = vmatprep.subr.mxu0 0.0
    %1225 = vmatpush1.msra.mxu0 %v151
    %1226 = vmatprep.mubr.f32.mxu0 %v999
    %1227 = vmatmul.mubr.f32.gmra.mrb[0].mxu0 %v998
    %v1228 = vpop.f32.mrb[0].mxu0
    %v1229 = vadd.f32 %v1154, %v1228
    %v1230 = vpop.f32.mrb[0].mxu0
    %1231 = vmatprep.mubr.f32.mxu0 %v1008
    %1232 = vmatmul.mubr.f32.gmra.mrb[0].mxu0 %v1007
    %v1233 = vpop.f32.mrb[0].mxu0
    %v1234 = vadd.f32 %v1159, %v1233
    %v1235 = vpop.f32.mrb[0].mxu0
    %1236 = vdwg.mxu0
    %1237 = vmatprep.subr.mxu0 0.0
    %1238 = vmatpush1.msra.mxu0 %v152
    %1239 = vmatprep.subr.mxu0 0.0
    %1240 = vmatpush1.msra.mxu0 %v153
    %1241 = vmatprep.subr.mxu0 0.0
    %1242 = vmatpush1.msra.mxu0 %v154
    %1243 = vmatprep.subr.mxu0 0.0
    %1244 = vmatpush1.msra.mxu0 %v155
    %1245 = vmatprep.subr.mxu0 0.0
    %1246 = vmatpush1.msra.mxu0 %v156
    %1247 = vmatprep.subr.mxu0 0.0
    %1248 = vmatpush1.msra.mxu0 %v157
    %1249 = vmatprep.subr.mxu0 0.0
    %1250 = vmatpush1.msra.mxu0 %v158
    %1251 = vmatprep.subr.mxu0 0.0
    %1252 = vmatpush1.msra.mxu0 %v159
    %1253 = vmatprep.subr.mxu0 0.0
    %1254 = vmatpush1.msra.mxu0 %v160
    %1255 = vmatprep.subr.mxu0 0.0
    %1256 = vmatpush1.msra.mxu0 %v161
    %1257 = vmatprep.subr.mxu0 0.0
    %1258 = vmatpush1.msra.mxu0 %v162
    %1259 = vmatprep.subr.mxu0 0.0
    %1260 = vmatpush1.msra.mxu0 %v163
    %1261 = vmatprep.subr.mxu0 0.0
    %1262 = vmatpush1.msra.mxu0 %v164
    %1263 = vmatprep.subr.mxu0 0.0
    %1264 = vmatpush1.msra.mxu0 %v165
    %1265 = vmatprep.subr.mxu0 0.0
    %1266 = vmatpush1.msra.mxu0 %v166
    %1267 = vmatprep.subr.mxu0 0.0
    %1268 = vmatpush1.msra.mxu0 %v167
    %1269 = vmatprep.subr.mxu0 0.0
    %1270 = vmatpush1.msra.mxu0 %v168
    %1271 = vmatprep.subr.mxu0 0.0
    %1272 = vmatpush1.msra.mxu0 %v169
    %1273 = vmatprep.subr.mxu0 0.0
    %1274 = vmatpush1.msra.mxu0 %v170
    %1275 = vmatprep.subr.mxu0 0.0
    %1276 = vmatpush1.msra.mxu0 %v171
    %1277 = vmatprep.subr.mxu0 0.0
    %1278 = vmatpush1.msra.mxu0 %v172
    %1279 = vmatprep.subr.mxu0 0.0
    %1280 = vmatpush1.msra.mxu0 %v173
    %1281 = vmatprep.subr.mxu0 0.0
    %1282 = vmatpush1.msra.mxu0 %v174
    %1283 = vmatprep.subr.mxu0 0.0
    %1284 = vmatpush1.msra.mxu0 %v175
    %1285 = vmatprep.subr.mxu0 0.0
    %1286 = vmatpush1.msra.mxu0 %v176
    %1287 = vmatprep.subr.mxu0 0.0
    %1288 = vmatpush1.msra.mxu0 %v177
    %1289 = vmatprep.subr.mxu0 0.0
    %1290 = vmatpush1.msra.mxu0 %v178
    %1291 = vmatprep.subr.mxu0 0.0
    %1292 = vmatpush1.msra.mxu0 %v179
    %1293 = vmatprep.subr.mxu0 0.0
    %1294 = vmatpush1.msra.mxu0 %v180
    %1295 = vmatprep.subr.mxu0 0.0
    %1296 = vmatpush1.msra.mxu0 %v181
    %1297 = vmatprep.subr.mxu0 0.0
    %1298 = vmatpush1.msra.mxu0 %v182
    %1299 = vmatprep.subr.mxu0 0.0
    %1300 = vmatpush1.msra.mxu0 %v183
    %1301 = vmatprep.mubr.f32.mxu0 %v1001
    %1302 = vmatmul.mubr.f32.gmra.mrb[0].mxu0 %v1000
    %v1303 = vpop.f32.mrb[0].mxu0
    %v1304 = vadd.f32 %v1229, %v1303
    %v1305 = vpop.f32.mrb[0].mxu0
    %1306 = vmatprep.mubr.f32.mxu0 %v1010
    %1307 = vmatmul.mubr.f32.gmra.mrb[0].mxu0 %v1009
    %v1308 = vpop.f32.mrb[0].mxu0
    %v1309 = vadd.f32 %v1234, %v1308
    %v1310 = vpop.f32.mrb[0].mxu0
    %1311 = vdwg.mxu0
    %1312 = vmatprep.subr.mxu0 0.0
    %1313 = vmatpush1.msra.mxu0 %v184
    %1314 = vmatprep.subr.mxu0 0.0
    %1315 = vmatpush1.msra.mxu0 %v185
    %1316 = vmatprep.subr.mxu0 0.0
    %1317 = vmatpush1.msra.mxu0 %v186
    %1318 = vmatprep.subr.mxu0 0.0
    %1319 = vmatpush1.msra.mxu0 %v187
    %1320 = vmatprep.subr.mxu0 0.0
    %1321 = vmatpush1.msra.mxu0 %v188
    %1322 = vmatprep.subr.mxu0 0.0
    %1323 = vmatpush1.msra.mxu0 %v189
    %1324 = vmatprep.subr.mxu0 0.0
    %1325 = vmatpush1.msra.mxu0 %v190
    %1326 = vmatprep.subr.mxu0 0.0
    %1327 = vmatpush1.msra.mxu0 %v191
    %1328 = vmatprep.subr.mxu0 0.0
    %1329 = vmatpush1.msra.mxu0 %v192
    %1330 = vmatprep.subr.mxu0 0.0
    %1331 = vmatpush1.msra.mxu0 %v193
    %1332 = vmatprep.subr.mxu0 0.0
    %1333 = vmatpush1.msra.mxu0 %v194
    %1334 = vmatprep.subr.mxu0 0.0
    %1335 = vmatpush1.msra.mxu0 %v195
    %1336 = vmatprep.subr.mxu0 0.0
    %1337 = vmatpush1.msra.mxu0 %v196
    %1338 = vmatprep.subr.mxu0 0.0
    %1339 = vmatpush1.msra.mxu0 %v197
    %1340 = vmatprep.subr.mxu0 0.0
    %1341 = vmatpush1.msra.mxu0 %v198
    %1342 = vmatprep.subr.mxu0 0.0
    %1343 = vmatpush1.msra.mxu0 %v199
    %1344 = vmatprep.subr.mxu0 0.0
    %1345 = vmatpush1.msra.mxu0 0.0
    %1346 = vmatprep.subr.mxu0 0.0
    %1347 = vmatpush1.msra.mxu0 0.0
    %1348 = vmatprep.subr.mxu0 0.0
    %1349 = vmatpush1.msra.mxu0 0.0
    %1350 = vmatprep.subr.mxu0 0.0
    %1351 = vmatpush1.msra.mxu0 0.0
    %1352 = vmatprep.subr.mxu0 0.0
    %1353 = vmatpush1.msra.mxu0 0.0
    %1354 = vmatprep.subr.mxu0 0.0
    %1355 = vmatpush1.msra.mxu0 0.0
    %1356 = vmatprep.subr.mxu0 0.0
    %1357 = vmatpush1.msra.mxu0 0.0
    %1358 = vmatprep.subr.mxu0 0.0
    %1359 = vmatpush1.msra.mxu0 0.0
    %1360 = vmatprep.subr.mxu0 0.0
    %1361 = vmatpush1.msra.mxu0 0.0
    %1362 = vmatprep.subr.mxu0 0.0
    %1363 = vmatpush1.msra.mxu0 0.0
    %1364 = vmatprep.subr.mxu0 0.0
    %1365 = vmatpush1.msra.mxu0 0.0
    %1366 = vmatprep.subr.mxu0 0.0
    %1367 = vmatpush1.msra.mxu0 0.0
    %1368 = vmatprep.subr.mxu0 0.0
    %1369 = vmatpush1.msra.mxu0 0.0
    %1370 = vmatprep.subr.mxu0 0.0
    %1371 = vmatpush1.msra.mxu0 0.0
    %1372 = vmatprep.subr.mxu0 0.0
    %1373 = vmatpush1.msra.mxu0 0.0
    %1374 = vmatprep.subr.mxu0 0.0
    %1375 = vmatpush1.msra.mxu0 0.0
    %1376 = vmatprep.mubr.f32.mxu0 0.0
    %1377 = vmatmul.mubr.f32.gmra.mrb[0].mxu0 %v1002
    %v1378 = vpop.f32.mrb[0].mxu0
    %v1379 = vadd.f32 %v1304, %v1378
    %v1380 = vpop.f32.mrb[0].mxu0
    %1381 = vmatprep.mubr.f32.mxu0 0.0
    %1382 = vmatmul.mubr.f32.gmra.mrb[0].mxu0 %v1011
    %v1383 = vpop.f32.mrb[0].mxu0
    %v1384 = vadd.f32 %v1309, %v1383
    %v1385 = vpop.f32.mrb[0].mxu0
    %1386 = vdwg.mxu0
    %v1387 = vmul.f32 %v1379, 0.11111111
    %v1388 = vmul.f32 %v1384, 0.11111111
    %1389 = vst [vmem:[#allocation8 + $0x10] sm:$0xff] %v1387
    %1390 = vst [vmem:[#allocation8 + $0x28] sm:$0xff] %v1388
    // Predicated region
    $region26: #{tpu_custom_call.1} parent=1 // pred_check
      _
    $region27: #{tpu_custom_call.1} parent=1 // pred_check_branch
      %1392 = sbr.rel (0) target = $region29
    $region28: #{tpu_custom_call.1} parent=1 // pred_region
      %s1394 = ssub.s32 768, 768
      %1395 = vsyncadd [#allocation4], %s1394
      %s1396 = sshll.u32 [#allocation8], 4
      %s1397 = int_to_ptr.vmem [resolvable:$true] %s1396
      %1402 = dma.vmem_to_hbm [thread:$0]  %s1397, 768, %s3, [#allocation4], 384, 384, 24
    $region29: #{tpu_custom_call.1} parent=1 // pred_fallthru
      _
    // Predicated region
    $region30: #{tpu_custom_call.1} parent=1 // pred_check
      _
    $region31: #{tpu_custom_call.1} parent=1 // pred_check_branch
      %1404 = sbr.rel (0) target = $region33
    $region32: #{tpu_custom_call.1} parent=1 // pred_region
      %1405 = dma.done [#allocation4], 768
    $region33: #{tpu_custom_call.1} parent=1 // pred_fallthru
      _
    %1406 = vsyncpa [#allocation3], 1
    %1407 = vsyncpa [#allocation6], 1
    %1408 = vsyncpa [#allocation4], 1

</llo_original>
